<compile_context>
chip_gen: v7x
topology: tpu7x:2x2x1
jax: 0.10.0
libtpu: 0.0.40
codegen_flags: <defaults>
</compile_context>

<pallas_src>
import jax
import jax.numpy as jnp
from jax.experimental import pallas as pl
from jax.experimental.pallas import tpu as pltpu

# Small, self-consistent shapes (max_length == T is required by the bmm in forward()).
T_LEN = 8           # sequence length == max_length
BATCH = 4
INPUT_SIZE = 32
HIDDEN = 32
OUTPUT_SIZE = 8

# ---- packed-layout constants (shared by fuse_params / wrapper / kernel) ----
BATCH_PAD = 8                      # batch rows padded to one full sublane block
GW = 256                           # packed gate width  (>= 6*HIDDEN, multiple of 128)
C_WIH = 0                          # w_ih  columns [0, 256)
C_WHH = C_WIH + GW                 # w_hh  columns [256, 512)
C_ATTN = C_WHH + GW                # attn  columns [512, 520)
C_COMB = C_ATTN + T_LEN            # comb  columns [520, 552)
C_OUT = C_COMB + HIDDEN            # out   columns [552, 560)
SLAB_W = 640                       # slab width  (multiple of 128, >= 560)
ROW_BIAS = 2 * HIDDEN              # bias row index (weights occupy rows [0, 64))
SLAB_H = 72                        # slab rows   (multiple of 8, >= 65)
OUT_W = 128                        # packed output lane width (y | hidden | attn_w | pad)


# --------------------------- Fused GRU + attention kernel ---------------------------
def fused_attention_kernel(x_ref,        # (T*8, 2I)  row block t: [x[t] | x[T-1-t]], rows 4:8 zero
                           w_ref,        # (72, 640)  packed parameter slab (see fuse_params)
                           o_ref):       # (8, 128)   packed output  [y | hidden | attn_w | pad]
    T, I, H, O = T_LEN, INPUT_SIZE, HIDDEN, OUTPUT_SIZE
    BP, H2 = BATCH_PAD, 2 * HIDDEN
    f32 = jnp.float32

    # ---- static views into the packed parameter slab (zero-cost ref slices) ----
    w_ih = w_ref[0:2 * I, C_WIH:C_WIH + GW]                        # (2I, 256) block-diag, gate-grouped
    w_hh = w_ref[0:H2, C_WHH:C_WHH + GW]                           # (2H, 256) block-diag, gate-grouped
    b_ih = w_ref[ROW_BIAS:ROW_BIAS + 1, C_WIH:C_WIH + GW]          # (1, 256)
    b_hh = w_ref[ROW_BIAS:ROW_BIAS + 1, C_WHH:C_WHH + GW]          # (1, 256)
    attn_w = w_ref[0:H2, C_ATTN:C_ATTN + T]                        # (2H, T)
    attn_b = w_ref[ROW_BIAS:ROW_BIAS + 1, C_ATTN:C_ATTN + T]       # (1, T)
    comb_w = w_ref[0:H2, C_COMB:C_COMB + H]                        # (2H, H)
    comb_b = w_ref[ROW_BIAS:ROW_BIAS + 1, C_COMB:C_COMB + H]       # (1, H)
    out_w = w_ref[0:H, C_OUT:C_OUT + O]                            # (H, O)
    out_b = w_ref[ROW_BIAS:ROW_BIAS + 1, C_OUT:C_OUT + O]          # (1, O)

    # Hoist the recurrent-bias broadcast out of the unrolled loop (no CSE of broadcast_in_dim).
    b_hh_full = jnp.broadcast_to(b_hh, (BP, GW))                   # (8, 256)

    # ---- Hoisted input projection: one matmul for all timesteps and both directions. ----
    # gi_all[t*8:(t+1)*8] = gate-grouped [r_f r_b | z_f z_b | n_f n_b | pad] for
    #   fwd input x[t] and bwd input x[T-1-t].
    gi_all = jnp.dot(x_ref[...], w_ih, preferred_element_type=f32) + b_ih     # (T*8, 256)

    # ---- Recurrence: lane-stacked [fwd | bwd] hidden, fully unrolled (T = 8 static). ----
    h = jnp.zeros((BP, H2), f32)
    states = []                                                    # states[s] = [fwd@t=s | bwd@t=T-1-s]
    for s in range(T):
        gi = gi_all[s * BP:(s + 1) * BP, :]                        # (8, 256) sublane-aligned slice
        gh = jnp.dot(h, w_hh, preferred_element_type=f32) + b_hh_full           # (8, 256)
        # PyTorch GRU cell, gate order [r, z, n]; both directions in one pass.
        rz = jax.nn.sigmoid(gi[:, 0:2 * H2] + gh[:, 0:2 * H2])     # r|z for both dirs, full 128 lanes
        r = rz[:, 0:H2]
        z = rz[:, H2:2 * H2]
        n = jnp.tanh(gi[:, 2 * H2:3 * H2] + r * gh[:, 2 * H2:3 * H2])
        h = (1.0 - z) * n + z * h
        states.append(h)

    # hidden == cat(hidden[0], hidden[1]): final fwd (time T-1) | final bwd (time 0) == states[-1].
    hidden = states[T - 1]                                         # (8, 2H)

    # ---- Attention head ----
    lane = jax.lax.broadcasted_iota(jnp.int32, (BP, H2), 1)
    fwd_mask = lane < H                                            # hoisted lane-half selector

    def apply_attn(aw):                                            # einsum('bt,tbd->bd'), q == 1
        # GRU output at time t: fwd half = states[t][:, :H], bwd half = states[T-1-t][:, H:].
        # -> pair aw[:, s] with the fwd half and aw[:, T-1-s] with the bwd half of states[s].
        terms = []
        for s in range(T):                                         # broadcasts are independent
            cf = jnp.broadcast_to(aw[:, s:s + 1], (BP, H2))
            cb = jnp.broadcast_to(aw[:, T - 1 - s:T - s], (BP, H2))
            terms.append(jnp.where(fwd_mask, cf, cb) * states[s])
        while len(terms) > 1:                                      # balanced tree: depth log2(T)
            nxt = [terms[i] + terms[i + 1] for i in range(0, len(terms) - 1, 2)]
            if len(terms) % 2:
                nxt.append(terms[-1])
            terms = nxt
        return terms[0]                                            # (8, 2H)

    # attn_weights = self.attn(hidden)   (raw logits, no softmax -- as in the PyTorch forward)
    aw1 = jnp.dot(hidden, attn_w, preferred_element_type=f32) + attn_b          # (8, T)
    # torch.bmm(aw1.unsqueeze(1), output).squeeze(1)
    ctx1 = apply_attn(aw1)                                                       # (8, 2H)
    # softmax(self.attn(ctx1))  -- F.softmax default dim=1 for 2D input
    logits = jnp.dot(ctx1, attn_w, preferred_element_type=f32) + attn_b          # (8, T)
    m = jnp.max(logits, axis=1, keepdims=True)
    e = jnp.exp(logits - m)
    aw2 = e / jnp.sum(e, axis=1, keepdims=True)                                  # (8, T)
    # attn_applied = torch.bmm(aw2.unsqueeze(1), output).squeeze(1)
    ctx2 = apply_attn(aw2)                                                        # (8, 2H)
    # relu(attn_combine(...)) then out(...)
    comb = jnp.maximum(
        jnp.dot(ctx2, comb_w, preferred_element_type=f32) + comb_b, 0.0)          # (8, H)
    y = jnp.dot(comb, out_w, preferred_element_type=f32) + out_b                  # (8, O)

    # ---- Single lane-dense packed store: [ y | hidden | attn_weights | pad ] ----
    pad = jnp.zeros((BP, OUT_W - (O + H2 + T)), f32)
    o_ref[...] = jnp.concatenate([y, hidden, aw2, pad], axis=1)                   # (8, 128)


# ------------------------------ Parameter packing --------------------------------
def fuse_params(p):
    """Pack ALL parameters into one pre-padded f32 slab (one HBM->VMEM DMA).

    Rows 0:64  -> weights:  [ w_ih_packed | w_hh_packed | attn_w | comb_w | out_w(padded) | 0 ]
    Row  64    -> biases:   [ b_ih_packed | b_hh_packed | attn_b | comb_b | out_b        | 0 ]
    Rows 65:72 -> zero padding (sublane multiple of 8).

    GRU weights are packed block-diagonally over directions with gate-type-grouped columns
    [r_f r_b | z_f z_b | n_f n_b | 0-pad to 256] so fwd+bwd gates come from one matmul.
    """
    H, I, T, O = HIDDEN, INPUT_SIZE, T_LEN, OUTPUT_SIZE
    f32 = jnp.float32

    def pack_w(w, direction):                 # w: (R, 3H) [r|z|n] for one direction
        R = w.shape[0]
        z = jnp.zeros((R, H), f32)
        parts = []
        for g in range(3):                    # r, z, n
            blk = w[:, g * H:(g + 1) * H]
            parts += ([blk, z] if direction == 0 else [z, blk])
        parts.append(jnp.zeros((R, GW - 6 * H), f32))
        return jnp.concatenate(parts, axis=1)                     # (R, 256)

    def pack_b(bf, bb):
        parts = []
        for g in range(3):
            parts += [bf[:, g * H:(g + 1) * H], bb[:, g * H:(g + 1) * H]]
        parts.append(jnp.zeros((1, GW - 6 * H), f32))
        return jnp.concatenate(parts, axis=1)                     # (1, 256)

    w_ih = jnp.concatenate([pack_w(p['w_ih_f'], 0), pack_w(p['w_ih_b'], 1)], axis=0)   # (2I, 256)
    w_hh = jnp.concatenate([pack_w(p['w_hh_f'], 0), pack_w(p['w_hh_b'], 1)], axis=0)   # (2H, 256)
    out_w_pad = jnp.concatenate([p['out_w'], jnp.zeros((H, O), f32)], axis=0)          # (2H, O)

    col_pad = SLAB_W - (C_OUT + O)
    w_rows = jnp.concatenate(
        [w_ih, w_hh, p['attn_w'], p['comb_w'], out_w_pad, jnp.zeros((2 * H, col_pad), f32)],
        axis=1)                                                                        # (64, 640)
    b_row = jnp.concatenate(
        [pack_b(p['b_ih_f'], p['b_ih_b']), pack_b(p['b_hh_f'], p['b_hh_b']),
         p['attn_b'], p['comb_b'], p['out_b'], jnp.zeros((1, col_pad), f32)],
        axis=1)                                                                        # (1, 640)
    slab = jnp.concatenate(
        [w_rows, b_row, jnp.zeros((SLAB_H - ROW_BIAS - 1, SLAB_W), f32)], axis=0)      # (72, 640)
    return slab


# ------------------------------ Wrapper ---------------------------------------
@jax.jit
def attention_forward(x, w_slab):
    """x: (T, B, I) time-major input; w_slab: packed parameter slab from fuse_params."""
    T, B, I = x.shape
    H = HIDDEN

    # Pre-assemble per-timestep gi blocks: pair x[t] (fwd) with x[T-1-t] (bwd) along lanes,
    # pad the batch to 8 rows so every in-kernel row slice starts on a sublane boundary.
    x_pair = jnp.concatenate([x, x[::-1]], axis=-1)                 # (T, B, 2I)
    x_pair = jnp.pad(x_pair, ((0, 0), (0, BATCH_PAD - B), (0, 0)))  # (T, 8, 2I)
    x2d = x_pair.reshape(T * BATCH_PAD, 2 * I)                      # (64, 64)

    vm = pl.BlockSpec(memory_space=pltpu.MemorySpace.VMEM)
    packed = pl.pallas_call(
        fused_attention_kernel,
        out_shape=jax.ShapeDtypeStruct((BATCH_PAD, OUT_W), jnp.float32),
        in_specs=[vm, vm],
        out_specs=vm,
    )(x2d, w_slab)

    y = packed[:B, 0:OUTPUT_SIZE]
    hidden = packed[:B, OUTPUT_SIZE:OUTPUT_SIZE + 2 * H]
    attn_weights = packed[:B, OUTPUT_SIZE + 2 * H:OUTPUT_SIZE + 2 * H + T]
    return y, hidden, attn_weights


# --------------------------- Pure-JAX reference --------------------------------
def reference_forward(x, p):
    T, B, _ = x.shape
    H = HIDDEN

    def cell(x_t, h, w_ih, w_hh, b_ih, b_hh):
        gi = x_t @ w_ih + b_ih
        gh = h @ w_hh + b_hh
        r = jax.nn.sigmoid(gi[:, :H] + gh[:, :H])
        z = jax.nn.sigmoid(gi[:, H:2 * H] + gh[:, H:2 * H])
        n = jnp.tanh(gi[:, 2 * H:] + r * gh[:, 2 * H:])
        return (1.0 - z) * n + z * h

    h_f = jnp.zeros((B, H), jnp.float32)
    h_b = jnp.zeros((B, H), jnp.float32)
    outs_f = []
    outs_b = [None] * T
    for t in range(T):
        h_f = cell(x[t], h_f, p['w_ih_f'], p['w_hh_f'], p['b_ih_f'], p['b_hh_f'])
        outs_f.append(h_f)
    for t in range(T):
        tb = T - 1 - t
        h_b = cell(x[tb], h_b, p['w_ih_b'], p['w_hh_b'], p['b_ih_b'], p['b_hh_b'])
        outs_b[tb] = h_b
    output = jnp.stack([jnp.concatenate([outs_f[t], outs_b[t]], -1) for t in range(T)], 0)
    output = jnp.transpose(output, (1, 0, 2))
    hidden = jnp.concatenate([h_f, h_b], -1)

    aw1 = hidden @ p['attn_w'] + p['attn_b']
    ctx1 = jnp.einsum('bt,btd->bd', aw1, output)
    aw2 = jax.nn.softmax(ctx1 @ p['attn_w'] + p['attn_b'], axis=1)
    ctx2 = jnp.einsum('bt,btd->bd', aw2, output)
    comb = jax.nn.relu(ctx2 @ p['comb_w'] + p['comb_b'])
    y = comb @ p['out_w'] + p['out_b']
    return y, hidden, aw2


# ------------------------------- Main -------------------------------------------
def make_params(key):
    H, I, T, O = HIDDEN, INPUT_SIZE, T_LEN, OUTPUT_SIZE
    k = 1.0 / jnp.sqrt(jnp.float32(H))
    keys = jax.random.split(key, 16)

    def u(kk, shape):
        return jax.random.uniform(kk, shape, jnp.float32, -k, k)

    # GRU weights stored pre-transposed for right-multiplication (x @ W), gate order [r, z, n].
    return {
        'w_ih_f': u(keys[0], (I, 3 * H)), 'w_hh_f': u(keys[1], (H, 3 * H)),
        'b_ih_f': u(keys[2], (1, 3 * H)), 'b_hh_f': u(keys[3], (1, 3 * H)),
        'w_ih_b': u(keys[4], (I, 3 * H)), 'w_hh_b': u(keys[5], (H, 3 * H)),
        'b_ih_b': u(keys[6], (1, 3 * H)), 'b_hh_b': u(keys[7], (1, 3 * H)),
        'attn_w': u(keys[8], (2 * H, T)), 'attn_b': u(keys[9], (1, T)),
        'comb_w': u(keys[10], (2 * H, H)), 'comb_b': u(keys[11], (1, H)),
        'out_w': u(keys[12], (H, O)),     'out_b': u(keys[13], (1, O)),
    }


if __name__ == "__main__":
    key = jax.random.PRNGKey(0)
    kx, kp = jax.random.split(key)
    x = jax.random.normal(kx, (T_LEN, BATCH, INPUT_SIZE), jnp.float32)
    params = make_params(kp)
    w_slab = fuse_params(params)        # one-time packing, outside the hot path

    y, hidden, attn_w = attention_forward(x, w_slab)
    jax.block_until_ready((y, hidden, attn_w))

    y_ref, hidden_ref, attn_ref = reference_forward(x, params)
    assert jnp.allclose(y, y_ref, atol=2e-3, rtol=2e-3)
    assert jnp.allclose(hidden, hidden_ref, atol=2e-3, rtol=2e-3)
    assert jnp.allclose(attn_w, attn_ref, atol=2e-3, rtol=2e-3)

    print("KERNEL_OK")
</pallas_src>

<mosaic_0001>
module attributes {stable_mosaic.version = 11 : i64} {
  func.func @fused_attention_kernel(%arg0: memref<64x64xf32, #tpu.memory_space<vmem>>, %arg1: memref<72x640xf32, #tpu.memory_space<vmem>>, %arg2: memref<8x128xf32, #tpu.memory_space<vmem>>) attributes {dimension_semantics = [], scalar_prefetch = 0 : i64, scratch_operands = 0 : i64, tpu.core_type = #tpu.core_type<tc>} {
    %c0 = arith.constant 0 : index
    %c0_0 = arith.constant 0 : index
    %0 = vector.load %arg1[%c0, %c0_0] : memref<72x640xf32, #tpu.memory_space<vmem>>, vector<64x256xf32>
    %c0_1 = arith.constant 0 : index
    %c256 = arith.constant 256 : index
    %1 = vector.load %arg1[%c0_1, %c256] : memref<72x640xf32, #tpu.memory_space<vmem>>, vector<64x256xf32>
    %c64 = arith.constant 64 : index
    %c0_2 = arith.constant 0 : index
    %2 = vector.load %arg1[%c64, %c0_2] : memref<72x640xf32, #tpu.memory_space<vmem>>, vector<1x256xf32>
    %c64_3 = arith.constant 64 : index
    %c256_4 = arith.constant 256 : index
    %3 = vector.load %arg1[%c64_3, %c256_4] : memref<72x640xf32, #tpu.memory_space<vmem>>, vector<1x256xf32>
    %c0_5 = arith.constant 0 : index
    %c512 = arith.constant 512 : index
    %4 = vector.load %arg1[%c0_5, %c512] : memref<72x640xf32, #tpu.memory_space<vmem>>, vector<64x8xf32>
    %c64_6 = arith.constant 64 : index
    %c512_7 = arith.constant 512 : index
    %5 = vector.load %arg1[%c64_6, %c512_7] : memref<72x640xf32, #tpu.memory_space<vmem>>, vector<1x8xf32>
    %c0_8 = arith.constant 0 : index
    %c520 = arith.constant 520 : index
    %6 = vector.load %arg1[%c0_8, %c520] : memref<72x640xf32, #tpu.memory_space<vmem>>, vector<64x32xf32>
    %c64_9 = arith.constant 64 : index
    %c520_10 = arith.constant 520 : index
    %7 = vector.load %arg1[%c64_9, %c520_10] : memref<72x640xf32, #tpu.memory_space<vmem>>, vector<1x32xf32>
    %c0_11 = arith.constant 0 : index
    %c552 = arith.constant 552 : index
    %8 = vector.load %arg1[%c0_11, %c552] : memref<72x640xf32, #tpu.memory_space<vmem>>, vector<32x8xf32>
    %c64_12 = arith.constant 64 : index
    %c552_13 = arith.constant 552 : index
    %9 = vector.load %arg1[%c64_12, %c552_13] : memref<72x640xf32, #tpu.memory_space<vmem>>, vector<1x8xf32>
    %10 = vector.shape_cast %3 : vector<1x256xf32> to vector<1x256xf32>
    %11 = vector.broadcast %10 : vector<1x256xf32> to vector<8x256xf32>
    %c0_14 = arith.constant 0 : index
    %c0_15 = arith.constant 0 : index
    %12 = vector.load %arg0[%c0_14, %c0_15] : memref<64x64xf32, #tpu.memory_space<vmem>>, vector<64x64xf32>
    %cst = arith.constant dense<0.000000e+00> : vector<64x256xf32>
    %13 = tpu.matmul %12, %0, %cst {dimension_numbers = #tpu.dot_dimension_numbers<[1], [0], [0], [1], [0, 0, 1, 1], [], []>} : vector<64x64xf32>, vector<64x256xf32>, vector<64x256xf32> -> vector<64x256xf32>
    %14 = vector.broadcast %2 : vector<1x256xf32> to vector<64x256xf32>
    %15 = arith.addf %13, %14 : vector<64x256xf32>
    %cst_16 = arith.constant 0.000000e+00 : f32
    %16 = vector.broadcast %cst_16 : f32 to vector<8x64xf32>
    %17 = vector.extract_strided_slice %15 {offsets = [0, 0], sizes = [8, 256], strides = [1, 1]} : vector<64x256xf32> to vector<8x256xf32>
    %cst_17 = arith.constant dense<0.000000e+00> : vector<8x256xf32>
    %18 = tpu.matmul %16, %1, %cst_17 {dimension_numbers = #tpu.dot_dimension_numbers<[1], [0], [0], [1], [0, 0, 1, 1], [], []>} : vector<8x64xf32>, vector<64x256xf32>, vector<8x256xf32> -> vector<8x256xf32>
    %19 = arith.addf %18, %11 : vector<8x256xf32>
    %20 = vector.extract_strided_slice %17 {offsets = [0, 0], sizes = [8, 128], strides = [1, 1]} : vector<8x256xf32> to vector<8x128xf32>
    %21 = vector.extract_strided_slice %19 {offsets = [0, 0], sizes = [8, 128], strides = [1, 1]} : vector<8x256xf32> to vector<8x128xf32>
    %22 = arith.addf %20, %21 : vector<8x128xf32>
    %23 = arith.negf %22 : vector<8x128xf32>
    %24 = math.exp %23 : vector<8x128xf32>
    %cst_18 = arith.constant 1.000000e+00 : f32
    %25 = vector.broadcast %cst_18 : f32 to vector<8x128xf32>
    %26 = arith.addf %25, %24 : vector<8x128xf32>
    %27 = arith.divf %25, %26 : vector<8x128xf32>
    %28 = vector.extract_strided_slice %27 {offsets = [0, 0], sizes = [8, 64], strides = [1, 1]} : vector<8x128xf32> to vector<8x64xf32>
    %29 = vector.extract_strided_slice %27 {offsets = [0, 64], sizes = [8, 64], strides = [1, 1]} : vector<8x128xf32> to vector<8x64xf32>
    %30 = vector.extract_strided_slice %17 {offsets = [0, 128], sizes = [8, 64], strides = [1, 1]} : vector<8x256xf32> to vector<8x64xf32>
    %31 = vector.extract_strided_slice %19 {offsets = [0, 128], sizes = [8, 64], strides = [1, 1]} : vector<8x256xf32> to vector<8x64xf32>
    %32 = arith.mulf %28, %31 : vector<8x64xf32>
    %33 = arith.addf %30, %32 : vector<8x64xf32>
    %34 = math.tanh %33 : vector<8x64xf32>
    %cst_19 = arith.constant 1.000000e+00 : f32
    %35 = vector.broadcast %cst_19 : f32 to vector<8x64xf32>
    %36 = arith.subf %35, %29 : vector<8x64xf32>
    %37 = arith.mulf %36, %34 : vector<8x64xf32>
    %38 = arith.mulf %29, %16 : vector<8x64xf32>
    %39 = arith.addf %37, %38 : vector<8x64xf32>
    %40 = vector.extract_strided_slice %15 {offsets = [8, 0], sizes = [8, 256], strides = [1, 1]} : vector<64x256xf32> to vector<8x256xf32>
    %cst_20 = arith.constant dense<0.000000e+00> : vector<8x256xf32>
    %41 = tpu.matmul %39, %1, %cst_20 {dimension_numbers = #tpu.dot_dimension_numbers<[1], [0], [0], [1], [0, 0, 1, 1], [], []>} : vector<8x64xf32>, vector<64x256xf32>, vector<8x256xf32> -> vector<8x256xf32>
    %42 = arith.addf %41, %11 : vector<8x256xf32>
    %43 = vector.extract_strided_slice %40 {offsets = [0, 0], sizes = [8, 128], strides = [1, 1]} : vector<8x256xf32> to vector<8x128xf32>
    %44 = vector.extract_strided_slice %42 {offsets = [0, 0], sizes = [8, 128], strides = [1, 1]} : vector<8x256xf32> to vector<8x128xf32>
    %45 = arith.addf %43, %44 : vector<8x128xf32>
    %46 = arith.negf %45 : vector<8x128xf32>
    %47 = math.exp %46 : vector<8x128xf32>
    %cst_21 = arith.constant 1.000000e+00 : f32
    %48 = vector.broadcast %cst_21 : f32 to vector<8x128xf32>
    %49 = arith.addf %48, %47 : vector<8x128xf32>
    %50 = arith.divf %48, %49 : vector<8x128xf32>
    %51 = vector.extract_strided_slice %50 {offsets = [0, 0], sizes = [8, 64], strides = [1, 1]} : vector<8x128xf32> to vector<8x64xf32>
    %52 = vector.extract_strided_slice %50 {offsets = [0, 64], sizes = [8, 64], strides = [1, 1]} : vector<8x128xf32> to vector<8x64xf32>
    %53 = vector.extract_strided_slice %40 {offsets = [0, 128], sizes = [8, 64], strides = [1, 1]} : vector<8x256xf32> to vector<8x64xf32>
    %54 = vector.extract_strided_slice %42 {offsets = [0, 128], sizes = [8, 64], strides = [1, 1]} : vector<8x256xf32> to vector<8x64xf32>
    %55 = arith.mulf %51, %54 : vector<8x64xf32>
    %56 = arith.addf %53, %55 : vector<8x64xf32>
    %57 = math.tanh %56 : vector<8x64xf32>
    %cst_22 = arith.constant 1.000000e+00 : f32
    %58 = vector.broadcast %cst_22 : f32 to vector<8x64xf32>
    %59 = arith.subf %58, %52 : vector<8x64xf32>
    %60 = arith.mulf %59, %57 : vector<8x64xf32>
    %61 = arith.mulf %52, %39 : vector<8x64xf32>
    %62 = arith.addf %60, %61 : vector<8x64xf32>
    %63 = vector.extract_strided_slice %15 {offsets = [16, 0], sizes = [8, 256], strides = [1, 1]} : vector<64x256xf32> to vector<8x256xf32>
    %cst_23 = arith.constant dense<0.000000e+00> : vector<8x256xf32>
    %64 = tpu.matmul %62, %1, %cst_23 {dimension_numbers = #tpu.dot_dimension_numbers<[1], [0], [0], [1], [0, 0, 1, 1], [], []>} : vector<8x64xf32>, vector<64x256xf32>, vector<8x256xf32> -> vector<8x256xf32>
    %65 = arith.addf %64, %11 : vector<8x256xf32>
    %66 = vector.extract_strided_slice %63 {offsets = [0, 0], sizes = [8, 128], strides = [1, 1]} : vector<8x256xf32> to vector<8x128xf32>
    %67 = vector.extract_strided_slice %65 {offsets = [0, 0], sizes = [8, 128], strides = [1, 1]} : vector<8x256xf32> to vector<8x128xf32>
    %68 = arith.addf %66, %67 : vector<8x128xf32>
    %69 = arith.negf %68 : vector<8x128xf32>
    %70 = math.exp %69 : vector<8x128xf32>
    %cst_24 = arith.constant 1.000000e+00 : f32
    %71 = vector.broadcast %cst_24 : f32 to vector<8x128xf32>
    %72 = arith.addf %71, %70 : vector<8x128xf32>
    %73 = arith.divf %71, %72 : vector<8x128xf32>
    %74 = vector.extract_strided_slice %73 {offsets = [0, 0], sizes = [8, 64], strides = [1, 1]} : vector<8x128xf32> to vector<8x64xf32>
    %75 = vector.extract_strided_slice %73 {offsets = [0, 64], sizes = [8, 64], strides = [1, 1]} : vector<8x128xf32> to vector<8x64xf32>
    %76 = vector.extract_strided_slice %63 {offsets = [0, 128], sizes = [8, 64], strides = [1, 1]} : vector<8x256xf32> to vector<8x64xf32>
    %77 = vector.extract_strided_slice %65 {offsets = [0, 128], sizes = [8, 64], strides = [1, 1]} : vector<8x256xf32> to vector<8x64xf32>
    %78 = arith.mulf %74, %77 : vector<8x64xf32>
    %79 = arith.addf %76, %78 : vector<8x64xf32>
    %80 = math.tanh %79 : vector<8x64xf32>
    %cst_25 = arith.constant 1.000000e+00 : f32
    %81 = vector.broadcast %cst_25 : f32 to vector<8x64xf32>
    %82 = arith.subf %81, %75 : vector<8x64xf32>
    %83 = arith.mulf %82, %80 : vector<8x64xf32>
    %84 = arith.mulf %75, %62 : vector<8x64xf32>
    %85 = arith.addf %83, %84 : vector<8x64xf32>
    %86 = vector.extract_strided_slice %15 {offsets = [24, 0], sizes = [8, 256], strides = [1, 1]} : vector<64x256xf32> to vector<8x256xf32>
    %cst_26 = arith.constant dense<0.000000e+00> : vector<8x256xf32>
    %87 = tpu.matmul %85, %1, %cst_26 {dimension_numbers = #tpu.dot_dimension_numbers<[1], [0], [0], [1], [0, 0, 1, 1], [], []>} : vector<8x64xf32>, vector<64x256xf32>, vector<8x256xf32> -> vector<8x256xf32>
    %88 = arith.addf %87, %11 : vector<8x256xf32>
    %89 = vector.extract_strided_slice %86 {offsets = [0, 0], sizes = [8, 128], strides = [1, 1]} : vector<8x256xf32> to vector<8x128xf32>
    %90 = vector.extract_strided_slice %88 {offsets = [0, 0], sizes = [8, 128], strides = [1, 1]} : vector<8x256xf32> to vector<8x128xf32>
    %91 = arith.addf %89, %90 : vector<8x128xf32>
    %92 = arith.negf %91 : vector<8x128xf32>
    %93 = math.exp %92 : vector<8x128xf32>
    %cst_27 = arith.constant 1.000000e+00 : f32
    %94 = vector.broadcast %cst_27 : f32 to vector<8x128xf32>
    %95 = arith.addf %94, %93 : vector<8x128xf32>
    %96 = arith.divf %94, %95 : vector<8x128xf32>
    %97 = vector.extract_strided_slice %96 {offsets = [0, 0], sizes = [8, 64], strides = [1, 1]} : vector<8x128xf32> to vector<8x64xf32>
    %98 = vector.extract_strided_slice %96 {offsets = [0, 64], sizes = [8, 64], strides = [1, 1]} : vector<8x128xf32> to vector<8x64xf32>
    %99 = vector.extract_strided_slice %86 {offsets = [0, 128], sizes = [8, 64], strides = [1, 1]} : vector<8x256xf32> to vector<8x64xf32>
    %100 = vector.extract_strided_slice %88 {offsets = [0, 128], sizes = [8, 64], strides = [1, 1]} : vector<8x256xf32> to vector<8x64xf32>
    %101 = arith.mulf %97, %100 : vector<8x64xf32>
    %102 = arith.addf %99, %101 : vector<8x64xf32>
    %103 = math.tanh %102 : vector<8x64xf32>
    %cst_28 = arith.constant 1.000000e+00 : f32
    %104 = vector.broadcast %cst_28 : f32 to vector<8x64xf32>
    %105 = arith.subf %104, %98 : vector<8x64xf32>
    %106 = arith.mulf %105, %103 : vector<8x64xf32>
    %107 = arith.mulf %98, %85 : vector<8x64xf32>
    %108 = arith.addf %106, %107 : vector<8x64xf32>
    %109 = vector.extract_strided_slice %15 {offsets = [32, 0], sizes = [8, 256], strides = [1, 1]} : vector<64x256xf32> to vector<8x256xf32>
    %cst_29 = arith.constant dense<0.000000e+00> : vector<8x256xf32>
    %110 = tpu.matmul %108, %1, %cst_29 {dimension_numbers = #tpu.dot_dimension_numbers<[1], [0], [0], [1], [0, 0, 1, 1], [], []>} : vector<8x64xf32>, vector<64x256xf32>, vector<8x256xf32> -> vector<8x256xf32>
    %111 = arith.addf %110, %11 : vector<8x256xf32>
    %112 = vector.extract_strided_slice %109 {offsets = [0, 0], sizes = [8, 128], strides = [1, 1]} : vector<8x256xf32> to vector<8x128xf32>
    %113 = vector.extract_strided_slice %111 {offsets = [0, 0], sizes = [8, 128], strides = [1, 1]} : vector<8x256xf32> to vector<8x128xf32>
    %114 = arith.addf %112, %113 : vector<8x128xf32>
    %115 = arith.negf %114 : vector<8x128xf32>
    %116 = math.exp %115 : vector<8x128xf32>
    %cst_30 = arith.constant 1.000000e+00 : f32
    %117 = vector.broadcast %cst_30 : f32 to vector<8x128xf32>
    %118 = arith.addf %117, %116 : vector<8x128xf32>
    %119 = arith.divf %117, %118 : vector<8x128xf32>
    %120 = vector.extract_strided_slice %119 {offsets = [0, 0], sizes = [8, 64], strides = [1, 1]} : vector<8x128xf32> to vector<8x64xf32>
    %121 = vector.extract_strided_slice %119 {offsets = [0, 64], sizes = [8, 64], strides = [1, 1]} : vector<8x128xf32> to vector<8x64xf32>
    %122 = vector.extract_strided_slice %109 {offsets = [0, 128], sizes = [8, 64], strides = [1, 1]} : vector<8x256xf32> to vector<8x64xf32>
    %123 = vector.extract_strided_slice %111 {offsets = [0, 128], sizes = [8, 64], strides = [1, 1]} : vector<8x256xf32> to vector<8x64xf32>
    %124 = arith.mulf %120, %123 : vector<8x64xf32>
    %125 = arith.addf %122, %124 : vector<8x64xf32>
    %126 = math.tanh %125 : vector<8x64xf32>
    %cst_31 = arith.constant 1.000000e+00 : f32
    %127 = vector.broadcast %cst_31 : f32 to vector<8x64xf32>
    %128 = arith.subf %127, %121 : vector<8x64xf32>
    %129 = arith.mulf %128, %126 : vector<8x64xf32>
    %130 = arith.mulf %121, %108 : vector<8x64xf32>
    %131 = arith.addf %129, %130 : vector<8x64xf32>
    %132 = vector.extract_strided_slice %15 {offsets = [40, 0], sizes = [8, 256], strides = [1, 1]} : vector<64x256xf32> to vector<8x256xf32>
    %cst_32 = arith.constant dense<0.000000e+00> : vector<8x256xf32>
    %133 = tpu.matmul %131, %1, %cst_32 {dimension_numbers = #tpu.dot_dimension_numbers<[1], [0], [0], [1], [0, 0, 1, 1], [], []>} : vector<8x64xf32>, vector<64x256xf32>, vector<8x256xf32> -> vector<8x256xf32>
    %134 = arith.addf %133, %11 : vector<8x256xf32>
    %135 = vector.extract_strided_slice %132 {offsets = [0, 0], sizes = [8, 128], strides = [1, 1]} : vector<8x256xf32> to vector<8x128xf32>
    %136 = vector.extract_strided_slice %134 {offsets = [0, 0], sizes = [8, 128], strides = [1, 1]} : vector<8x256xf32> to vector<8x128xf32>
    %137 = arith.addf %135, %136 : vector<8x128xf32>
    %138 = arith.negf %137 : vector<8x128xf32>
    %139 = math.exp %138 : vector<8x128xf32>
    %cst_33 = arith.constant 1.000000e+00 : f32
    %140 = vector.broadcast %cst_33 : f32 to vector<8x128xf32>
    %141 = arith.addf %140, %139 : vector<8x128xf32>
    %142 = arith.divf %140, %141 : vector<8x128xf32>
    %143 = vector.extract_strided_slice %142 {offsets = [0, 0], sizes = [8, 64], strides = [1, 1]} : vector<8x128xf32> to vector<8x64xf32>
    %144 = vector.extract_strided_slice %142 {offsets = [0, 64], sizes = [8, 64], strides = [1, 1]} : vector<8x128xf32> to vector<8x64xf32>
    %145 = vector.extract_strided_slice %132 {offsets = [0, 128], sizes = [8, 64], strides = [1, 1]} : vector<8x256xf32> to vector<8x64xf32>
    %146 = vector.extract_strided_slice %134 {offsets = [0, 128], sizes = [8, 64], strides = [1, 1]} : vector<8x256xf32> to vector<8x64xf32>
    %147 = arith.mulf %143, %146 : vector<8x64xf32>
    %148 = arith.addf %145, %147 : vector<8x64xf32>
    %149 = math.tanh %148 : vector<8x64xf32>
    %cst_34 = arith.constant 1.000000e+00 : f32
    %150 = vector.broadcast %cst_34 : f32 to vector<8x64xf32>
    %151 = arith.subf %150, %144 : vector<8x64xf32>
    %152 = arith.mulf %151, %149 : vector<8x64xf32>
    %153 = arith.mulf %144, %131 : vector<8x64xf32>
    %154 = arith.addf %152, %153 : vector<8x64xf32>
    %155 = vector.extract_strided_slice %15 {offsets = [48, 0], sizes = [8, 256], strides = [1, 1]} : vector<64x256xf32> to vector<8x256xf32>
    %cst_35 = arith.constant dense<0.000000e+00> : vector<8x256xf32>
    %156 = tpu.matmul %154, %1, %cst_35 {dimension_numbers = #tpu.dot_dimension_numbers<[1], [0], [0], [1], [0, 0, 1, 1], [], []>} : vector<8x64xf32>, vector<64x256xf32>, vector<8x256xf32> -> vector<8x256xf32>
    %157 = arith.addf %156, %11 : vector<8x256xf32>
    %158 = vector.extract_strided_slice %155 {offsets = [0, 0], sizes = [8, 128], strides = [1, 1]} : vector<8x256xf32> to vector<8x128xf32>
    %159 = vector.extract_strided_slice %157 {offsets = [0, 0], sizes = [8, 128], strides = [1, 1]} : vector<8x256xf32> to vector<8x128xf32>
    %160 = arith.addf %158, %159 : vector<8x128xf32>
    %161 = arith.negf %160 : vector<8x128xf32>
    %162 = math.exp %161 : vector<8x128xf32>
    %cst_36 = arith.constant 1.000000e+00 : f32
    %163 = vector.broadcast %cst_36 : f32 to vector<8x128xf32>
    %164 = arith.addf %163, %162 : vector<8x128xf32>
    %165 = arith.divf %163, %164 : vector<8x128xf32>
    %166 = vector.extract_strided_slice %165 {offsets = [0, 0], sizes = [8, 64], strides = [1, 1]} : vector<8x128xf32> to vector<8x64xf32>
    %167 = vector.extract_strided_slice %165 {offsets = [0, 64], sizes = [8, 64], strides = [1, 1]} : vector<8x128xf32> to vector<8x64xf32>
    %168 = vector.extract_strided_slice %155 {offsets = [0, 128], sizes = [8, 64], strides = [1, 1]} : vector<8x256xf32> to vector<8x64xf32>
    %169 = vector.extract_strided_slice %157 {offsets = [0, 128], sizes = [8, 64], strides = [1, 1]} : vector<8x256xf32> to vector<8x64xf32>
    %170 = arith.mulf %166, %169 : vector<8x64xf32>
    %171 = arith.addf %168, %170 : vector<8x64xf32>
    %172 = math.tanh %171 : vector<8x64xf32>
    %cst_37 = arith.constant 1.000000e+00 : f32
    %173 = vector.broadcast %cst_37 : f32 to vector<8x64xf32>
    %174 = arith.subf %173, %167 : vector<8x64xf32>
    %175 = arith.mulf %174, %172 : vector<8x64xf32>
    %176 = arith.mulf %167, %154 : vector<8x64xf32>
    %177 = arith.addf %175, %176 : vector<8x64xf32>
    %178 = vector.extract_strided_slice %15 {offsets = [56, 0], sizes = [8, 256], strides = [1, 1]} : vector<64x256xf32> to vector<8x256xf32>
    %cst_38 = arith.constant dense<0.000000e+00> : vector<8x256xf32>
    %179 = tpu.matmul %177, %1, %cst_38 {dimension_numbers = #tpu.dot_dimension_numbers<[1], [0], [0], [1], [0, 0, 1, 1], [], []>} : vector<8x64xf32>, vector<64x256xf32>, vector<8x256xf32> -> vector<8x256xf32>
    %180 = arith.addf %179, %11 : vector<8x256xf32>
    %181 = vector.extract_strided_slice %178 {offsets = [0, 0], sizes = [8, 128], strides = [1, 1]} : vector<8x256xf32> to vector<8x128xf32>
    %182 = vector.extract_strided_slice %180 {offsets = [0, 0], sizes = [8, 128], strides = [1, 1]} : vector<8x256xf32> to vector<8x128xf32>
    %183 = arith.addf %181, %182 : vector<8x128xf32>
    %184 = arith.negf %183 : vector<8x128xf32>
    %185 = math.exp %184 : vector<8x128xf32>
    %cst_39 = arith.constant 1.000000e+00 : f32
    %186 = vector.broadcast %cst_39 : f32 to vector<8x128xf32>
    %187 = arith.addf %186, %185 : vector<8x128xf32>
    %188 = arith.divf %186, %187 : vector<8x128xf32>
    %189 = vector.extract_strided_slice %188 {offsets = [0, 0], sizes = [8, 64], strides = [1, 1]} : vector<8x128xf32> to vector<8x64xf32>
    %190 = vector.extract_strided_slice %188 {offsets = [0, 64], sizes = [8, 64], strides = [1, 1]} : vector<8x128xf32> to vector<8x64xf32>
    %191 = vector.extract_strided_slice %178 {offsets = [0, 128], sizes = [8, 64], strides = [1, 1]} : vector<8x256xf32> to vector<8x64xf32>
    %192 = vector.extract_strided_slice %180 {offsets = [0, 128], sizes = [8, 64], strides = [1, 1]} : vector<8x256xf32> to vector<8x64xf32>
    %193 = arith.mulf %189, %192 : vector<8x64xf32>
    %194 = arith.addf %191, %193 : vector<8x64xf32>
    %195 = math.tanh %194 : vector<8x64xf32>
    %cst_40 = arith.constant 1.000000e+00 : f32
    %196 = vector.broadcast %cst_40 : f32 to vector<8x64xf32>
    %197 = arith.subf %196, %190 : vector<8x64xf32>
    %198 = arith.mulf %197, %195 : vector<8x64xf32>
    %199 = arith.mulf %190, %177 : vector<8x64xf32>
    %200 = arith.addf %198, %199 : vector<8x64xf32>
    %201 = tpu.iota {dimensions = array<i32: 1>} : vector<8x64xi32>
    %c32_i32 = arith.constant 32 : i32
    %202 = vector.broadcast %c32_i32 : i32 to vector<8x64xi32>
    %203 = arith.cmpi slt, %201, %202 : vector<8x64xi32>
    %cst_41 = arith.constant dense<0.000000e+00> : vector<8x8xf32>
    %204 = tpu.matmul %200, %4, %cst_41 {dimension_numbers = #tpu.dot_dimension_numbers<[1], [0], [0], [1], [0, 0, 1, 1], [], []>} : vector<8x64xf32>, vector<64x8xf32>, vector<8x8xf32> -> vector<8x8xf32>
    %205 = vector.broadcast %5 : vector<1x8xf32> to vector<8x8xf32>
    %206 = arith.addf %204, %205 : vector<8x8xf32>
    %207 = vector.extract_strided_slice %206 {offsets = [0, 0], sizes = [8, 1], strides = [1, 1]} : vector<8x8xf32> to vector<8x1xf32>
    %208 = vector.shape_cast %207 : vector<8x1xf32> to vector<8x1xf32>
    %209 = vector.broadcast %208 : vector<8x1xf32> to vector<8x64xf32>
    %210 = vector.extract_strided_slice %206 {offsets = [0, 7], sizes = [8, 1], strides = [1, 1]} : vector<8x8xf32> to vector<8x1xf32>
    %211 = vector.shape_cast %210 : vector<8x1xf32> to vector<8x1xf32>
    %212 = vector.broadcast %211 : vector<8x1xf32> to vector<8x64xf32>
    %213 = arith.select %203, %209, %212 : vector<8x64xi1>, vector<8x64xf32>
    %214 = arith.mulf %213, %39 : vector<8x64xf32>
    %215 = vector.extract_strided_slice %206 {offsets = [0, 1], sizes = [8, 1], strides = [1, 1]} : vector<8x8xf32> to vector<8x1xf32>
    %216 = vector.shape_cast %215 : vector<8x1xf32> to vector<8x1xf32>
    %217 = vector.broadcast %216 : vector<8x1xf32> to vector<8x64xf32>
    %218 = vector.extract_strided_slice %206 {offsets = [0, 6], sizes = [8, 1], strides = [1, 1]} : vector<8x8xf32> to vector<8x1xf32>
    %219 = vector.shape_cast %218 : vector<8x1xf32> to vector<8x1xf32>
    %220 = vector.broadcast %219 : vector<8x1xf32> to vector<8x64xf32>
    %221 = arith.select %203, %217, %220 : vector<8x64xi1>, vector<8x64xf32>
    %222 = arith.mulf %221, %62 : vector<8x64xf32>
    %223 = vector.extract_strided_slice %206 {offsets = [0, 2], sizes = [8, 1], strides = [1, 1]} : vector<8x8xf32> to vector<8x1xf32>
    %224 = vector.shape_cast %223 : vector<8x1xf32> to vector<8x1xf32>
    %225 = vector.broadcast %224 : vector<8x1xf32> to vector<8x64xf32>
    %226 = vector.extract_strided_slice %206 {offsets = [0, 5], sizes = [8, 1], strides = [1, 1]} : vector<8x8xf32> to vector<8x1xf32>
    %227 = vector.shape_cast %226 : vector<8x1xf32> to vector<8x1xf32>
    %228 = vector.broadcast %227 : vector<8x1xf32> to vector<8x64xf32>
    %229 = arith.select %203, %225, %228 : vector<8x64xi1>, vector<8x64xf32>
    %230 = arith.mulf %229, %85 : vector<8x64xf32>
    %231 = vector.extract_strided_slice %206 {offsets = [0, 3], sizes = [8, 1], strides = [1, 1]} : vector<8x8xf32> to vector<8x1xf32>
    %232 = vector.shape_cast %231 : vector<8x1xf32> to vector<8x1xf32>
    %233 = vector.broadcast %232 : vector<8x1xf32> to vector<8x64xf32>
    %234 = vector.extract_strided_slice %206 {offsets = [0, 4], sizes = [8, 1], strides = [1, 1]} : vector<8x8xf32> to vector<8x1xf32>
    %235 = vector.shape_cast %234 : vector<8x1xf32> to vector<8x1xf32>
    %236 = vector.broadcast %235 : vector<8x1xf32> to vector<8x64xf32>
    %237 = arith.select %203, %233, %236 : vector<8x64xi1>, vector<8x64xf32>
    %238 = arith.mulf %237, %108 : vector<8x64xf32>
    %239 = vector.extract_strided_slice %206 {offsets = [0, 4], sizes = [8, 1], strides = [1, 1]} : vector<8x8xf32> to vector<8x1xf32>
    %240 = vector.shape_cast %239 : vector<8x1xf32> to vector<8x1xf32>
    %241 = vector.broadcast %240 : vector<8x1xf32> to vector<8x64xf32>
    %242 = vector.extract_strided_slice %206 {offsets = [0, 3], sizes = [8, 1], strides = [1, 1]} : vector<8x8xf32> to vector<8x1xf32>
    %243 = vector.shape_cast %242 : vector<8x1xf32> to vector<8x1xf32>
    %244 = vector.broadcast %243 : vector<8x1xf32> to vector<8x64xf32>
    %245 = arith.select %203, %241, %244 : vector<8x64xi1>, vector<8x64xf32>
    %246 = arith.mulf %245, %131 : vector<8x64xf32>
    %247 = vector.extract_strided_slice %206 {offsets = [0, 5], sizes = [8, 1], strides = [1, 1]} : vector<8x8xf32> to vector<8x1xf32>
    %248 = vector.shape_cast %247 : vector<8x1xf32> to vector<8x1xf32>
    %249 = vector.broadcast %248 : vector<8x1xf32> to vector<8x64xf32>
    %250 = vector.extract_strided_slice %206 {offsets = [0, 2], sizes = [8, 1], strides = [1, 1]} : vector<8x8xf32> to vector<8x1xf32>
    %251 = vector.shape_cast %250 : vector<8x1xf32> to vector<8x1xf32>
    %252 = vector.broadcast %251 : vector<8x1xf32> to vector<8x64xf32>
    %253 = arith.select %203, %249, %252 : vector<8x64xi1>, vector<8x64xf32>
    %254 = arith.mulf %253, %154 : vector<8x64xf32>
    %255 = vector.extract_strided_slice %206 {offsets = [0, 6], sizes = [8, 1], strides = [1, 1]} : vector<8x8xf32> to vector<8x1xf32>
    %256 = vector.shape_cast %255 : vector<8x1xf32> to vector<8x1xf32>
    %257 = vector.broadcast %256 : vector<8x1xf32> to vector<8x64xf32>
    %258 = vector.extract_strided_slice %206 {offsets = [0, 1], sizes = [8, 1], strides = [1, 1]} : vector<8x8xf32> to vector<8x1xf32>
    %259 = vector.shape_cast %258 : vector<8x1xf32> to vector<8x1xf32>
    %260 = vector.broadcast %259 : vector<8x1xf32> to vector<8x64xf32>
    %261 = arith.select %203, %257, %260 : vector<8x64xi1>, vector<8x64xf32>
    %262 = arith.mulf %261, %177 : vector<8x64xf32>
    %263 = vector.extract_strided_slice %206 {offsets = [0, 7], sizes = [8, 1], strides = [1, 1]} : vector<8x8xf32> to vector<8x1xf32>
    %264 = vector.shape_cast %263 : vector<8x1xf32> to vector<8x1xf32>
    %265 = vector.broadcast %264 : vector<8x1xf32> to vector<8x64xf32>
    %266 = vector.extract_strided_slice %206 {offsets = [0, 0], sizes = [8, 1], strides = [1, 1]} : vector<8x8xf32> to vector<8x1xf32>
    %267 = vector.shape_cast %266 : vector<8x1xf32> to vector<8x1xf32>
    %268 = vector.broadcast %267 : vector<8x1xf32> to vector<8x64xf32>
    %269 = arith.select %203, %265, %268 : vector<8x64xi1>, vector<8x64xf32>
    %270 = arith.mulf %269, %200 : vector<8x64xf32>
    %271 = arith.addf %214, %222 : vector<8x64xf32>
    %272 = arith.addf %230, %238 : vector<8x64xf32>
    %273 = arith.addf %246, %254 : vector<8x64xf32>
    %274 = arith.addf %262, %270 : vector<8x64xf32>
    %275 = arith.addf %271, %272 : vector<8x64xf32>
    %276 = arith.addf %273, %274 : vector<8x64xf32>
    %277 = arith.addf %275, %276 : vector<8x64xf32>
    %cst_42 = arith.constant dense<0.000000e+00> : vector<8x8xf32>
    %278 = tpu.matmul %277, %4, %cst_42 {dimension_numbers = #tpu.dot_dimension_numbers<[1], [0], [0], [1], [0, 0, 1, 1], [], []>} : vector<8x64xf32>, vector<64x8xf32>, vector<8x8xf32> -> vector<8x8xf32>
    %279 = vector.broadcast %5 : vector<1x8xf32> to vector<8x8xf32>
    %280 = arith.addf %278, %279 : vector<8x8xf32>
    %cst_43 = arith.constant dense<0xFF800000> : vector<8xf32>
    %281 = vector.multi_reduction <maximumf>, %280, %cst_43 [1] : vector<8x8xf32> to vector<8xf32>
    %282 = vector.shape_cast %281 : vector<8xf32> to vector<8x1xf32>
    %283 = vector.broadcast %282 : vector<8x1xf32> to vector<8x8xf32>
    %284 = arith.subf %280, %283 : vector<8x8xf32>
    %285 = math.exp %284 : vector<8x8xf32>
    %cst_44 = arith.constant dense<0.000000e+00> : vector<8xf32>
    %286 = vector.multi_reduction <add>, %285, %cst_44 [1] : vector<8x8xf32> to vector<8xf32>
    %287 = vector.shape_cast %286 : vector<8xf32> to vector<8x1xf32>
    %288 = vector.broadcast %287 : vector<8x1xf32> to vector<8x8xf32>
    %289 = arith.divf %285, %288 : vector<8x8xf32>
    %290 = vector.extract_strided_slice %289 {offsets = [0, 0], sizes = [8, 1], strides = [1, 1]} : vector<8x8xf32> to vector<8x1xf32>
    %291 = vector.shape_cast %290 : vector<8x1xf32> to vector<8x1xf32>
    %292 = vector.broadcast %291 : vector<8x1xf32> to vector<8x64xf32>
    %293 = vector.extract_strided_slice %289 {offsets = [0, 7], sizes = [8, 1], strides = [1, 1]} : vector<8x8xf32> to vector<8x1xf32>
    %294 = vector.shape_cast %293 : vector<8x1xf32> to vector<8x1xf32>
    %295 = vector.broadcast %294 : vector<8x1xf32> to vector<8x64xf32>
    %296 = arith.select %203, %292, %295 : vector<8x64xi1>, vector<8x64xf32>
    %297 = arith.mulf %296, %39 : vector<8x64xf32>
    %298 = vector.extract_strided_slice %289 {offsets = [0, 1], sizes = [8, 1], strides = [1, 1]} : vector<8x8xf32> to vector<8x1xf32>
    %299 = vector.shape_cast %298 : vector<8x1xf32> to vector<8x1xf32>
    %300 = vector.broadcast %299 : vector<8x1xf32> to vector<8x64xf32>
    %301 = vector.extract_strided_slice %289 {offsets = [0, 6], sizes = [8, 1], strides = [1, 1]} : vector<8x8xf32> to vector<8x1xf32>
    %302 = vector.shape_cast %301 : vector<8x1xf32> to vector<8x1xf32>
    %303 = vector.broadcast %302 : vector<8x1xf32> to vector<8x64xf32>
    %304 = arith.select %203, %300, %303 : vector<8x64xi1>, vector<8x64xf32>
    %305 = arith.mulf %304, %62 : vector<8x64xf32>
    %306 = vector.extract_strided_slice %289 {offsets = [0, 2], sizes = [8, 1], strides = [1, 1]} : vector<8x8xf32> to vector<8x1xf32>
    %307 = vector.shape_cast %306 : vector<8x1xf32> to vector<8x1xf32>
    %308 = vector.broadcast %307 : vector<8x1xf32> to vector<8x64xf32>
    %309 = vector.extract_strided_slice %289 {offsets = [0, 5], sizes = [8, 1], strides = [1, 1]} : vector<8x8xf32> to vector<8x1xf32>
    %310 = vector.shape_cast %309 : vector<8x1xf32> to vector<8x1xf32>
    %311 = vector.broadcast %310 : vector<8x1xf32> to vector<8x64xf32>
    %312 = arith.select %203, %308, %311 : vector<8x64xi1>, vector<8x64xf32>
    %313 = arith.mulf %312, %85 : vector<8x64xf32>
    %314 = vector.extract_strided_slice %289 {offsets = [0, 3], sizes = [8, 1], strides = [1, 1]} : vector<8x8xf32> to vector<8x1xf32>
    %315 = vector.shape_cast %314 : vector<8x1xf32> to vector<8x1xf32>
    %316 = vector.broadcast %315 : vector<8x1xf32> to vector<8x64xf32>
    %317 = vector.extract_strided_slice %289 {offsets = [0, 4], sizes = [8, 1], strides = [1, 1]} : vector<8x8xf32> to vector<8x1xf32>
    %318 = vector.shape_cast %317 : vector<8x1xf32> to vector<8x1xf32>
    %319 = vector.broadcast %318 : vector<8x1xf32> to vector<8x64xf32>
    %320 = arith.select %203, %316, %319 : vector<8x64xi1>, vector<8x64xf32>
    %321 = arith.mulf %320, %108 : vector<8x64xf32>
    %322 = vector.extract_strided_slice %289 {offsets = [0, 4], sizes = [8, 1], strides = [1, 1]} : vector<8x8xf32> to vector<8x1xf32>
    %323 = vector.shape_cast %322 : vector<8x1xf32> to vector<8x1xf32>
    %324 = vector.broadcast %323 : vector<8x1xf32> to vector<8x64xf32>
    %325 = vector.extract_strided_slice %289 {offsets = [0, 3], sizes = [8, 1], strides = [1, 1]} : vector<8x8xf32> to vector<8x1xf32>
    %326 = vector.shape_cast %325 : vector<8x1xf32> to vector<8x1xf32>
    %327 = vector.broadcast %326 : vector<8x1xf32> to vector<8x64xf32>
    %328 = arith.select %203, %324, %327 : vector<8x64xi1>, vector<8x64xf32>
    %329 = arith.mulf %328, %131 : vector<8x64xf32>
    %330 = vector.extract_strided_slice %289 {offsets = [0, 5], sizes = [8, 1], strides = [1, 1]} : vector<8x8xf32> to vector<8x1xf32>
    %331 = vector.shape_cast %330 : vector<8x1xf32> to vector<8x1xf32>
    %332 = vector.broadcast %331 : vector<8x1xf32> to vector<8x64xf32>
    %333 = vector.extract_strided_slice %289 {offsets = [0, 2], sizes = [8, 1], strides = [1, 1]} : vector<8x8xf32> to vector<8x1xf32>
    %334 = vector.shape_cast %333 : vector<8x1xf32> to vector<8x1xf32>
    %335 = vector.broadcast %334 : vector<8x1xf32> to vector<8x64xf32>
    %336 = arith.select %203, %332, %335 : vector<8x64xi1>, vector<8x64xf32>
    %337 = arith.mulf %336, %154 : vector<8x64xf32>
    %338 = vector.extract_strided_slice %289 {offsets = [0, 6], sizes = [8, 1], strides = [1, 1]} : vector<8x8xf32> to vector<8x1xf32>
    %339 = vector.shape_cast %338 : vector<8x1xf32> to vector<8x1xf32>
    %340 = vector.broadcast %339 : vector<8x1xf32> to vector<8x64xf32>
    %341 = vector.extract_strided_slice %289 {offsets = [0, 1], sizes = [8, 1], strides = [1, 1]} : vector<8x8xf32> to vector<8x1xf32>
    %342 = vector.shape_cast %341 : vector<8x1xf32> to vector<8x1xf32>
    %343 = vector.broadcast %342 : vector<8x1xf32> to vector<8x64xf32>
    %344 = arith.select %203, %340, %343 : vector<8x64xi1>, vector<8x64xf32>
    %345 = arith.mulf %344, %177 : vector<8x64xf32>
    %346 = vector.extract_strided_slice %289 {offsets = [0, 7], sizes = [8, 1], strides = [1, 1]} : vector<8x8xf32> to vector<8x1xf32>
    %347 = vector.shape_cast %346 : vector<8x1xf32> to vector<8x1xf32>
    %348 = vector.broadcast %347 : vector<8x1xf32> to vector<8x64xf32>
    %349 = vector.extract_strided_slice %289 {offsets = [0, 0], sizes = [8, 1], strides = [1, 1]} : vector<8x8xf32> to vector<8x1xf32>
    %350 = vector.shape_cast %349 : vector<8x1xf32> to vector<8x1xf32>
    %351 = vector.broadcast %350 : vector<8x1xf32> to vector<8x64xf32>
    %352 = arith.select %203, %348, %351 : vector<8x64xi1>, vector<8x64xf32>
    %353 = arith.mulf %352, %200 : vector<8x64xf32>
    %354 = arith.addf %297, %305 : vector<8x64xf32>
    %355 = arith.addf %313, %321 : vector<8x64xf32>
    %356 = arith.addf %329, %337 : vector<8x64xf32>
    %357 = arith.addf %345, %353 : vector<8x64xf32>
    %358 = arith.addf %354, %355 : vector<8x64xf32>
    %359 = arith.addf %356, %357 : vector<8x64xf32>
    %360 = arith.addf %358, %359 : vector<8x64xf32>
    %cst_45 = arith.constant dense<0.000000e+00> : vector<8x32xf32>
    %361 = tpu.matmul %360, %6, %cst_45 {dimension_numbers = #tpu.dot_dimension_numbers<[1], [0], [0], [1], [0, 0, 1, 1], [], []>} : vector<8x64xf32>, vector<64x32xf32>, vector<8x32xf32> -> vector<8x32xf32>
    %362 = vector.broadcast %7 : vector<1x32xf32> to vector<8x32xf32>
    %363 = arith.addf %361, %362 : vector<8x32xf32>
    %cst_46 = arith.constant 0.000000e+00 : f32
    %364 = vector.broadcast %cst_46 : f32 to vector<8x32xf32>
    %365 = arith.maximumf %363, %364 : vector<8x32xf32>
    %cst_47 = arith.constant dense<0.000000e+00> : vector<8x8xf32>
    %366 = tpu.matmul %365, %8, %cst_47 {dimension_numbers = #tpu.dot_dimension_numbers<[1], [0], [0], [1], [0, 0, 1, 1], [], []>} : vector<8x32xf32>, vector<32x8xf32>, vector<8x8xf32> -> vector<8x8xf32>
    %367 = vector.broadcast %9 : vector<1x8xf32> to vector<8x8xf32>
    %368 = arith.addf %366, %367 : vector<8x8xf32>
    %cst_48 = arith.constant 0.000000e+00 : f32
    %369 = vector.broadcast %cst_48 : f32 to vector<8x48xf32>
    %370 = tpu.concatenate %368, %200, %289, %369 in 1 : vector<8x8xf32>, vector<8x64xf32>, vector<8x8xf32>, vector<8x48xf32> -> vector<8x128xf32>
    %c0_49 = arith.constant 0 : index
    %c0_50 = arith.constant 0 : index
    %371 = vector.load %arg2[%c0_49, %c0_50] : memref<8x128xf32, #tpu.memory_space<vmem>>, vector<8x128xf32>
    tpu.vector_store %arg2[%c0_49, %c0_50], %370 {strides = array<i32>} : memref<8x128xf32, #tpu.memory_space<vmem>>, vector<8x128xf32>,
    return
  }
}

</mosaic_0001>

<llo_original>
// kernel: attention_forward.1
$region0: #{attention_forward.1}
  #allocation0 [shape = 'u32[]', space=smem, size = 0x4, offset = 0x4, fixed_abs, tag = 'smem constant byte address 0x4 - core index']
  #allocation1 [shape = 'u32[144,128]{1,0:T(1,128)}', space=vmem, size = 0x12000, scoped, tag = 'internal scratch']
  %s0 = inlined_call_operand.vmem [shape: f32[64,64], index: 0, kind: input, shape index: {}]
  %s1 = inlined_call_operand.hbm [shape: f32[72,640], index: 1, kind: input, shape index: {}]
  %s2 = inlined_call_operand.vmem [shape: f32[8,128], index: 2, kind: output, shape index: {}]
  %s3 = sld [smem:[#allocation0]]
  $region22: #{attention_forward.1} parent=0
    _
  %s5 = ssub.s32 1, %s3
  %s6 = scalar_select 0, %s5, %s3
  $region1: #{attention_forward.1} parent=0
    #allocation2 [shape = 'u8[184320]{0}', space=vmem, size = 0x2d000, scoped, tag = 'input window, operand 1, single buffered']
    #allocation3 [shape = 's32[1]{0}', space=sflag, size = 0x4, scoped, tag = 'scoped memory for attention_forward.1']
    %7 = vsyncpa [#allocation3], 0
    // Predicated region
    $region2: #{attention_forward.1} parent=1 // pred_check
      _
    $region3: #{attention_forward.1} parent=1 // pred_check_branch
      %9 = sbr.rel (0) target = $region5
    $region4: #{attention_forward.1} parent=1 // pred_region
      _
    $region5: #{attention_forward.1} parent=1 // pred_fallthru
      _
    // Predicated region
    $region6: #{attention_forward.1} parent=1 // pred_check
      _
    $region7: #{attention_forward.1} parent=1 // pred_check_branch
      %11 = sbr.rel (0) target = $region9
    $region8: #{attention_forward.1} parent=1 // pred_region
      %s13 = ssub.s32 5760, 5760
      %14 = vsyncadd [#allocation3], %s13
      %s15 = sshll.u32 [#allocation2], 4
      %s16 = int_to_ptr.vmem [resolvable:$true] %s15
      %21 = dma.hbm_to_vmem [thread:$0]  %s1, 5760, %s16, [#allocation3], 640, 640, 40
    $region9: #{attention_forward.1} parent=1 // pred_fallthru
      _
    // Predicated region
    $region10: #{attention_forward.1} parent=1 // pred_check
      _
    $region11: #{attention_forward.1} parent=1 // pred_check_branch
      %23 = sbr.rel (0) target = $region13
    $region12: #{attention_forward.1} parent=1 // pred_region
      %24 = dma.done [#allocation3], 5760
    $region13: #{attention_forward.1} parent=1 // pred_fallthru
      _
    %v25 = vld [vmem:[#allocation2] sm:$0xff]
    %v26 = vld [vmem:[#allocation2 + $0x8] sm:$0xff]
    %v27 = vld [vmem:[#allocation2 + $0x28] sm:$0xff]
    %v28 = vld [vmem:[#allocation2 + $0x30] sm:$0xff]
    %v29 = vld [vmem:[#allocation2 + $0x50] sm:$0xff]
    %v30 = vld [vmem:[#allocation2 + $0x58] sm:$0xff]
    %v31 = vld [vmem:[#allocation2 + $0x78] sm:$0xff]
    %v32 = vld [vmem:[#allocation2 + $0x80] sm:$0xff]
    %v33 = vld [vmem:[#allocation2 + $0xa0] sm:$0xff]
    %v34 = vld [vmem:[#allocation2 + $0xa8] sm:$0xff]
    %v35 = vld [vmem:[#allocation2 + $0xc8] sm:$0xff]
    %v36 = vld [vmem:[#allocation2 + $0xd0] sm:$0xff]
    %v37 = vld [vmem:[#allocation2 + $0xf0] sm:$0xff]
    %v38 = vld [vmem:[#allocation2 + $0xf8] sm:$0xff]
    %v39 = vld [vmem:[#allocation2 + $0x118] sm:$0xff]
    %v40 = vld [vmem:[#allocation2 + $0x120] sm:$0xff]
    %v41 = vld [vmem:[#allocation2 + $0x10] sm:$0xff]
    %v42 = vld [vmem:[#allocation2 + $0x18] sm:$0xff]
    %v43 = vld [vmem:[#allocation2 + $0x38] sm:$0xff]
    %v44 = vld [vmem:[#allocation2 + $0x40] sm:$0xff]
    %v45 = vld [vmem:[#allocation2 + $0x60] sm:$0xff]
    %v46 = vld [vmem:[#allocation2 + $0x68] sm:$0xff]
    %v47 = vld [vmem:[#allocation2 + $0x88] sm:$0xff]
    %v48 = vld [vmem:[#allocation2 + $0x90] sm:$0xff]
    %v49 = vld [vmem:[#allocation2 + $0xb0] sm:$0xff]
    %v50 = vld [vmem:[#allocation2 + $0xb8] sm:$0xff]
    %v51 = vld [vmem:[#allocation2 + $0xd8] sm:$0xff]
    %v52 = vld [vmem:[#allocation2 + $0xe0] sm:$0xff]
    %v53 = vld [vmem:[#allocation2 + $0x100] sm:$0xff]
    %v54 = vld [vmem:[#allocation2 + $0x108] sm:$0xff]
    %v55 = vld [vmem:[#allocation2 + $0x128] sm:$0xff]
    %v56 = vld [vmem:[#allocation2 + $0x130] sm:$0xff]
    %s57 = scalar_lea.vmem [#allocation2], 320
    %v58 = vld [vmem:[%s57] ss:$8 sm:$0x3]
    %s59 = scalar_lea.vmem [#allocation2], 336
    %v60 = vld [vmem:[%s59] ss:$8 sm:$0x3]
    %v61 = vld [vmem:[#allocation2 + $0x20] sm:$0xff]
    %v62 = vld [vmem:[#allocation2 + $0x48] sm:$0xff]
    %v63 = vld [vmem:[#allocation2 + $0x70] sm:$0xff]
    %v64 = vld [vmem:[#allocation2 + $0x98] sm:$0xff]
    %v65 = vld [vmem:[#allocation2 + $0xc0] sm:$0xff]
    %v66 = vld [vmem:[#allocation2 + $0xe8] sm:$0xff]
    %v67 = vld [vmem:[#allocation2 + $0x110] sm:$0xff]
    %v68 = vld [vmem:[#allocation2 + $0x138] sm:$0xff]
    %v69 = vld [vmem:[#allocation2 + $0x160] ss:$0 sm:$0xff]
    %v71 = vlaneseq
    %v72 = vshrl.u32 %v71, 7
    %v73 = vsub.s32 0, %v72
    %v74 = vrot.slane %v60, %v73
    %v75 = vlaneseq
    %v76 = vshrl.u32 %v75, 7
    %v77 = vsub.s32 1, %v76
    %v78 = vrot.slane %v60, %v77
    %v81 = vld [vmem:[%s0] sm:$0xff]
    %v82 = vld [vmem:[%s0 + $0x8] sm:$0xff]
    %v83 = vld [vmem:[%s0 + $0x10] sm:$0xff]
    %v84 = vld [vmem:[%s0 + $0x18] sm:$0xff]
    %v85 = vld [vmem:[%s0 + $0x20] sm:$0xff]
    %v86 = vld [vmem:[%s0 + $0x28] sm:$0xff]
    %v87 = vld [vmem:[%s0 + $0x30] sm:$0xff]
    %v88 = vld [vmem:[%s0 + $0x38] sm:$0xff]
    %v90 = vlaneseq
    %v91 = vshrl.u32 %v90, 7
    %v92 = vsub.s32 0, %v91
    %v93 = vrot.slane %v58, %v92
    %v94 = vlaneseq
    %v95 = vshrl.u32 %v94, 7
    %v96 = vsub.s32 1, %v95
    %v97 = vrot.slane %v58, %v96
    %vm100 = vcmask 523264
    %v102 = vsel %vm100, %v81, 0
    %v105 = vsel %vm100, %v82, 0
    %v108 = vsel %vm100, %v83, 0
    %v111 = vsel %vm100, %v84, 0
    %v114 = vsel %vm100, %v85, 0
    %v117 = vsel %vm100, %v86, 0
    %v120 = vsel %vm100, %v87, 0
    %v123 = vsel %vm100, %v88, 0
    %125 = vmatprep.subr.mxu0 %v26
    %126 = vmatpush1.msra.mxu0 %v25
    %127 = vmatprep.subr.mxu0 %v28
    %128 = vmatpush1.msra.mxu0 %v27
    %129 = vmatprep.subr.mxu0 %v30
    %130 = vmatpush1.msra.mxu0 %v29
    %131 = vmatprep.subr.mxu0 %v32
    %132 = vmatpush1.msra.mxu0 %v31
    %133 = vmatprep.subr.mxu0 %v34
    %134 = vmatpush1.msra.mxu0 %v33
    %135 = vmatprep.subr.mxu0 %v36
    %136 = vmatpush1.msra.mxu0 %v35
    %137 = vmatprep.subr.mxu0 %v38
    %138 = vmatpush1.msra.mxu0 %v37
    %139 = vmatprep.subr.mxu0 %v40
    %140 = vmatpush1.msra.mxu0 %v39
    %141 = vmatprep.subr.mxu0 0.0
    %142 = vmatpush1.msra.mxu0 0.0
    %143 = vmatprep.subr.mxu0 0.0
    %144 = vmatpush1.msra.mxu0 0.0
    %145 = vmatprep.subr.mxu0 0.0
    %146 = vmatpush1.msra.mxu0 0.0
    %147 = vmatprep.subr.mxu0 0.0
    %148 = vmatpush1.msra.mxu0 0.0
    %149 = vmatprep.subr.mxu0 0.0
    %150 = vmatpush1.msra.mxu0 0.0
    %151 = vmatprep.subr.mxu0 0.0
    %152 = vmatpush1.msra.mxu0 0.0
    %153 = vmatprep.subr.mxu0 0.0
    %154 = vmatpush1.msra.mxu0 0.0
    %155 = vmatprep.subr.mxu0 0.0
    %156 = vmatpush1.msra.mxu0 0.0
    %157 = vmatprep.subr.mxu0 0.0
    %158 = vmatpush1.msra.mxu0 0.0
    %159 = vmatprep.subr.mxu0 0.0
    %160 = vmatpush1.msra.mxu0 0.0
    %161 = vmatprep.subr.mxu0 0.0
    %162 = vmatpush1.msra.mxu0 0.0
    %163 = vmatprep.subr.mxu0 0.0
    %164 = vmatpush1.msra.mxu0 0.0
    %165 = vmatprep.subr.mxu0 0.0
    %166 = vmatpush1.msra.mxu0 0.0
    %167 = vmatprep.subr.mxu0 0.0
    %168 = vmatpush1.msra.mxu0 0.0
    %169 = vmatprep.subr.mxu0 0.0
    %170 = vmatpush1.msra.mxu0 0.0
    %171 = vmatprep.subr.mxu0 0.0
    %172 = vmatpush1.msra.mxu0 0.0
    %173 = vmatprep.subr.mxu0 0.0
    %174 = vmatpush1.msra.mxu0 0.0
    %175 = vmatprep.subr.mxu0 0.0
    %176 = vmatpush1.msra.mxu0 0.0
    %177 = vmatprep.subr.mxu0 0.0
    %178 = vmatpush1.msra.mxu0 0.0
    %179 = vmatprep.subr.mxu0 0.0
    %180 = vmatpush1.msra.mxu0 0.0
    %181 = vmatprep.subr.mxu0 0.0
    %182 = vmatpush1.msra.mxu0 0.0
    %183 = vmatprep.subr.mxu0 0.0
    %184 = vmatpush1.msra.mxu0 0.0
    %185 = vmatprep.subr.mxu0 0.0
    %186 = vmatpush1.msra.mxu0 0.0
    %187 = vmatprep.subr.mxu0 0.0
    %188 = vmatpush1.msra.mxu0 0.0
    %189 = vmatprep.mubr.f32.mxu0 0.0
    %190 = vmatmul.mubr.f32.gmra.mrb[0].mxu0 %v102
    %v191 = vpop.f32.mrb[0].mxu0
    %v192 = vadd.f32 %v93, %v191
    %v193 = vpop.f32.mrb[0].mxu0
    %v194 = vadd.f32 %v97, %v193
    %195 = vmatprep.mubr.f32.mxu0 0.0
    %196 = vmatmul.mubr.f32.gmra.mrb[0].mxu0 %v105
    %v197 = vpop.f32.mrb[0].mxu0
    %v198 = vadd.f32 %v93, %v197
    %v199 = vpop.f32.mrb[0].mxu0
    %v200 = vadd.f32 %v97, %v199
    %201 = vmatprep.mubr.f32.mxu0 0.0
    %202 = vmatmul.mubr.f32.gmra.mrb[0].mxu0 %v108
    %v203 = vpop.f32.mrb[0].mxu0
    %v204 = vadd.f32 %v93, %v203
    %v205 = vpop.f32.mrb[0].mxu0
    %v206 = vadd.f32 %v97, %v205
    %207 = vmatprep.mubr.f32.mxu0 0.0
    %208 = vmatmul.mubr.f32.gmra.mrb[0].mxu0 %v111
    %v209 = vpop.f32.mrb[0].mxu0
    %v210 = vadd.f32 %v93, %v209
    %v211 = vpop.f32.mrb[0].mxu0
    %v212 = vadd.f32 %v97, %v211
    %213 = vmatprep.mubr.f32.mxu0 0.0
    %214 = vmatmul.mubr.f32.gmra.mrb[0].mxu0 %v114
    %v215 = vpop.f32.mrb[0].mxu0
    %v216 = vadd.f32 %v93, %v215
    %v217 = vpop.f32.mrb[0].mxu0
    %v218 = vadd.f32 %v97, %v217
    %219 = vmatprep.mubr.f32.mxu0 0.0
    %220 = vmatmul.mubr.f32.gmra.mrb[0].mxu0 %v117
    %v221 = vpop.f32.mrb[0].mxu0
    %v222 = vadd.f32 %v93, %v221
    %v223 = vpop.f32.mrb[0].mxu0
    %v224 = vadd.f32 %v97, %v223
    %225 = vmatprep.mubr.f32.mxu0 0.0
    %226 = vmatmul.mubr.f32.gmra.mrb[0].mxu0 %v120
    %v227 = vpop.f32.mrb[0].mxu0
    %v228 = vadd.f32 %v93, %v227
    %v229 = vpop.f32.mrb[0].mxu0
    %v230 = vadd.f32 %v97, %v229
    %231 = vmatprep.mubr.f32.mxu0 0.0
    %232 = vmatmul.mubr.f32.gmra.mrb[0].mxu0 %v123
    %v233 = vpop.f32.mrb[0].mxu0
    %v234 = vadd.f32 %v93, %v233
    %v235 = vpop.f32.mrb[0].mxu0
    %v236 = vadd.f32 %v97, %v235
    %237 = vdwg.mxu0
    %v239 = vsel %vm100, 0.0, 0
    %241 = vmatprep.subr.mxu0 %v42
    %242 = vmatpush1.msra.mxu0 %v41
    %243 = vmatprep.subr.mxu0 %v44
    %244 = vmatpush1.msra.mxu0 %v43
    %245 = vmatprep.subr.mxu0 %v46
    %246 = vmatpush1.msra.mxu0 %v45
    %247 = vmatprep.subr.mxu0 %v48
    %248 = vmatpush1.msra.mxu0 %v47
    %249 = vmatprep.subr.mxu0 %v50
    %250 = vmatpush1.msra.mxu0 %v49
    %251 = vmatprep.subr.mxu0 %v52
    %252 = vmatpush1.msra.mxu0 %v51
    %253 = vmatprep.subr.mxu0 %v54
    %254 = vmatpush1.msra.mxu0 %v53
    %255 = vmatprep.subr.mxu0 %v56
    %256 = vmatpush1.msra.mxu0 %v55
    %257 = vmatprep.subr.mxu0 0.0
    %258 = vmatpush1.msra.mxu0 0.0
    %259 = vmatprep.subr.mxu0 0.0
    %260 = vmatpush1.msra.mxu0 0.0
    %261 = vmatprep.subr.mxu0 0.0
    %262 = vmatpush1.msra.mxu0 0.0
    %263 = vmatprep.subr.mxu0 0.0
    %264 = vmatpush1.msra.mxu0 0.0
    %265 = vmatprep.subr.mxu0 0.0
    %266 = vmatpush1.msra.mxu0 0.0
    %267 = vmatprep.subr.mxu0 0.0
    %268 = vmatpush1.msra.mxu0 0.0
    %269 = vmatprep.subr.mxu0 0.0
    %270 = vmatpush1.msra.mxu0 0.0
    %271 = vmatprep.subr.mxu0 0.0
    %272 = vmatpush1.msra.mxu0 0.0
    %273 = vmatprep.subr.mxu0 0.0
    %274 = vmatpush1.msra.mxu0 0.0
    %275 = vmatprep.subr.mxu0 0.0
    %276 = vmatpush1.msra.mxu0 0.0
    %277 = vmatprep.subr.mxu0 0.0
    %278 = vmatpush1.msra.mxu0 0.0
    %279 = vmatprep.subr.mxu0 0.0
    %280 = vmatpush1.msra.mxu0 0.0
    %281 = vmatprep.subr.mxu0 0.0
    %282 = vmatpush1.msra.mxu0 0.0
    %283 = vmatprep.subr.mxu0 0.0
    %284 = vmatpush1.msra.mxu0 0.0
    %285 = vmatprep.subr.mxu0 0.0
    %286 = vmatpush1.msra.mxu0 0.0
    %287 = vmatprep.subr.mxu0 0.0
    %288 = vmatpush1.msra.mxu0 0.0
    %289 = vmatprep.subr.mxu0 0.0
    %290 = vmatpush1.msra.mxu0 0.0
    %291 = vmatprep.subr.mxu0 0.0
    %292 = vmatpush1.msra.mxu0 0.0
    %293 = vmatprep.subr.mxu0 0.0
    %294 = vmatpush1.msra.mxu0 0.0
    %295 = vmatprep.subr.mxu0 0.0
    %296 = vmatpush1.msra.mxu0 0.0
    %297 = vmatprep.subr.mxu0 0.0
    %298 = vmatpush1.msra.mxu0 0.0
    %299 = vmatprep.subr.mxu0 0.0
    %300 = vmatpush1.msra.mxu0 0.0
    %301 = vmatprep.subr.mxu0 0.0
    %302 = vmatpush1.msra.mxu0 0.0
    %303 = vmatprep.subr.mxu0 0.0
    %304 = vmatpush1.msra.mxu0 0.0
    %305 = vmatprep.mubr.f32.mxu0 0.0
    %306 = vmatmul.mubr.f32.gmra.mrb[0].mxu0 %v239
    %v307 = vpop.f32.mrb[0].mxu0
    %v308 = vadd.f32 %v74, %v307
    %v309 = vpop.f32.mrb[0].mxu0
    %v310 = vadd.f32 %v78, %v309
    %311 = vdwg.mxu0
    %v312 = vadd.f32 %v192, %v308
    %v313 = vxor.u32 %v312, 2147483648
    %v314 = vmul.f32 %v313, 1.442695
    %v315 = vpow.pop %v314
    %v316 = vadd.f32 %v315, 1.0
    %v317 = vrcp.pop %v316
    %v318 = vmul.f32 1.0, %v317
    %v319 = vmul.f32 %v318, %v310
    %v320 = vadd.f32 %v194, %v319
    %v321 = vtanh.pop %v320
    %v322 = vsub.f32 1.0, %v318
    %324 = vrot.lane.b32.xlu0 %v321, 64
    %v325 = vpop.permute.xlu0 %324
    %v327 = vmul.f32 %v322, %v325
    %v328 = vmul.f32 %v318, 0.0
    %v329 = vadd.f32 %v327, %v328
    %331 = vrot.lane.b32.xlu0 %v329, 64
    %v332 = vpop.permute.xlu0 %331
    %v333 = vsel %vm100, %v332, 0
    %335 = vmatprep.subr.mxu0 %v42
    %336 = vmatpush1.msra.mxu0 %v41
    %337 = vmatprep.subr.mxu0 %v44
    %338 = vmatpush1.msra.mxu0 %v43
    %339 = vmatprep.subr.mxu0 %v46
    %340 = vmatpush1.msra.mxu0 %v45
    %341 = vmatprep.subr.mxu0 %v48
    %342 = vmatpush1.msra.mxu0 %v47
    %343 = vmatprep.subr.mxu0 %v50
    %344 = vmatpush1.msra.mxu0 %v49
    %345 = vmatprep.subr.mxu0 %v52
    %346 = vmatpush1.msra.mxu0 %v51
    %347 = vmatprep.subr.mxu0 %v54
    %348 = vmatpush1.msra.mxu0 %v53
    %349 = vmatprep.subr.mxu0 %v56
    %350 = vmatpush1.msra.mxu0 %v55
    %351 = vmatprep.subr.mxu0 0.0
    %352 = vmatpush1.msra.mxu0 0.0
    %353 = vmatprep.subr.mxu0 0.0
    %354 = vmatpush1.msra.mxu0 0.0
    %355 = vmatprep.subr.mxu0 0.0
    %356 = vmatpush1.msra.mxu0 0.0
    %357 = vmatprep.subr.mxu0 0.0
    %358 = vmatpush1.msra.mxu0 0.0
    %359 = vmatprep.subr.mxu0 0.0
    %360 = vmatpush1.msra.mxu0 0.0
    %361 = vmatprep.subr.mxu0 0.0
    %362 = vmatpush1.msra.mxu0 0.0
    %363 = vmatprep.subr.mxu0 0.0
    %364 = vmatpush1.msra.mxu0 0.0
    %365 = vmatprep.subr.mxu0 0.0
    %366 = vmatpush1.msra.mxu0 0.0
    %367 = vmatprep.subr.mxu0 0.0
    %368 = vmatpush1.msra.mxu0 0.0
    %369 = vmatprep.subr.mxu0 0.0
    %370 = vmatpush1.msra.mxu0 0.0
    %371 = vmatprep.subr.mxu0 0.0
    %372 = vmatpush1.msra.mxu0 0.0
    %373 = vmatprep.subr.mxu0 0.0
    %374 = vmatpush1.msra.mxu0 0.0
    %375 = vmatprep.subr.mxu0 0.0
    %376 = vmatpush1.msra.mxu0 0.0
    %377 = vmatprep.subr.mxu0 0.0
    %378 = vmatpush1.msra.mxu0 0.0
    %379 = vmatprep.subr.mxu0 0.0
    %380 = vmatpush1.msra.mxu0 0.0
    %381 = vmatprep.subr.mxu0 0.0
    %382 = vmatpush1.msra.mxu0 0.0
    %383 = vmatprep.subr.mxu0 0.0
    %384 = vmatpush1.msra.mxu0 0.0
    %385 = vmatprep.subr.mxu0 0.0
    %386 = vmatpush1.msra.mxu0 0.0
    %387 = vmatprep.subr.mxu0 0.0
    %388 = vmatpush1.msra.mxu0 0.0
    %389 = vmatprep.subr.mxu0 0.0
    %390 = vmatpush1.msra.mxu0 0.0
    %391 = vmatprep.subr.mxu0 0.0
    %392 = vmatpush1.msra.mxu0 0.0
    %393 = vmatprep.subr.mxu0 0.0
    %394 = vmatpush1.msra.mxu0 0.0
    %395 = vmatprep.subr.mxu0 0.0
    %396 = vmatpush1.msra.mxu0 0.0
    %397 = vmatprep.subr.mxu0 0.0
    %398 = vmatpush1.msra.mxu0 0.0
    %399 = vmatprep.mubr.f32.mxu0 0.0
    %400 = vmatmul.mubr.f32.gmra.mrb[0].mxu0 %v333
    %v401 = vpop.f32.mrb[0].mxu0
    %v402 = vadd.f32 %v74, %v401
    %v403 = vpop.f32.mrb[0].mxu0
    %v404 = vadd.f32 %v78, %v403
    %405 = vdwg.mxu0
    %v406 = vadd.f32 %v198, %v402
    %v407 = vxor.u32 %v406, 2147483648
    %v408 = vmul.f32 %v407, 1.442695
    %v409 = vpow.pop %v408
    %v410 = vadd.f32 %v409, 1.0
    %v411 = vrcp.pop %v410
    %v412 = vmul.f32 1.0, %v411
    %v413 = vmul.f32 %v412, %v404
    %v414 = vadd.f32 %v200, %v413
    %v415 = vtanh.pop %v414
    %v416 = vsub.f32 1.0, %v412
    %418 = vrot.lane.b32.xlu0 %v415, 64
    %v419 = vpop.permute.xlu0 %418
    %v421 = vmul.f32 %v416, %v419
    %v422 = vmul.f32 %v412, %v329
    %v423 = vadd.f32 %v421, %v422
    %425 = vrot.lane.b32.xlu0 %v423, 64
    %v426 = vpop.permute.xlu0 %425
    %v427 = vsel %vm100, %v426, 0
    %429 = vmatprep.subr.mxu0 %v42
    %430 = vmatpush1.msra.mxu0 %v41
    %431 = vmatprep.subr.mxu0 %v44
    %432 = vmatpush1.msra.mxu0 %v43
    %433 = vmatprep.subr.mxu0 %v46
    %434 = vmatpush1.msra.mxu0 %v45
    %435 = vmatprep.subr.mxu0 %v48
    %436 = vmatpush1.msra.mxu0 %v47
    %437 = vmatprep.subr.mxu0 %v50
    %438 = vmatpush1.msra.mxu0 %v49
    %439 = vmatprep.subr.mxu0 %v52
    %440 = vmatpush1.msra.mxu0 %v51
    %441 = vmatprep.subr.mxu0 %v54
    %442 = vmatpush1.msra.mxu0 %v53
    %443 = vmatprep.subr.mxu0 %v56
    %444 = vmatpush1.msra.mxu0 %v55
    %445 = vmatprep.subr.mxu0 0.0
    %446 = vmatpush1.msra.mxu0 0.0
    %447 = vmatprep.subr.mxu0 0.0
    %448 = vmatpush1.msra.mxu0 0.0
    %449 = vmatprep.subr.mxu0 0.0
    %450 = vmatpush1.msra.mxu0 0.0
    %451 = vmatprep.subr.mxu0 0.0
    %452 = vmatpush1.msra.mxu0 0.0
    %453 = vmatprep.subr.mxu0 0.0
    %454 = vmatpush1.msra.mxu0 0.0
    %455 = vmatprep.subr.mxu0 0.0
    %456 = vmatpush1.msra.mxu0 0.0
    %457 = vmatprep.subr.mxu0 0.0
    %458 = vmatpush1.msra.mxu0 0.0
    %459 = vmatprep.subr.mxu0 0.0
    %460 = vmatpush1.msra.mxu0 0.0
    %461 = vmatprep.subr.mxu0 0.0
    %462 = vmatpush1.msra.mxu0 0.0
    %463 = vmatprep.subr.mxu0 0.0
    %464 = vmatpush1.msra.mxu0 0.0
    %465 = vmatprep.subr.mxu0 0.0
    %466 = vmatpush1.msra.mxu0 0.0
    %467 = vmatprep.subr.mxu0 0.0
    %468 = vmatpush1.msra.mxu0 0.0
    %469 = vmatprep.subr.mxu0 0.0
    %470 = vmatpush1.msra.mxu0 0.0
    %471 = vmatprep.subr.mxu0 0.0
    %472 = vmatpush1.msra.mxu0 0.0
    %473 = vmatprep.subr.mxu0 0.0
    %474 = vmatpush1.msra.mxu0 0.0
    %475 = vmatprep.subr.mxu0 0.0
    %476 = vmatpush1.msra.mxu0 0.0
    %477 = vmatprep.subr.mxu0 0.0
    %478 = vmatpush1.msra.mxu0 0.0
    %479 = vmatprep.subr.mxu0 0.0
    %480 = vmatpush1.msra.mxu0 0.0
    %481 = vmatprep.subr.mxu0 0.0
    %482 = vmatpush1.msra.mxu0 0.0
    %483 = vmatprep.subr.mxu0 0.0
    %484 = vmatpush1.msra.mxu0 0.0
    %485 = vmatprep.subr.mxu0 0.0
    %486 = vmatpush1.msra.mxu0 0.0
    %487 = vmatprep.subr.mxu0 0.0
    %488 = vmatpush1.msra.mxu0 0.0
    %489 = vmatprep.subr.mxu0 0.0
    %490 = vmatpush1.msra.mxu0 0.0
    %491 = vmatprep.subr.mxu0 0.0
    %492 = vmatpush1.msra.mxu0 0.0
    %493 = vmatprep.mubr.f32.mxu0 0.0
    %494 = vmatmul.mubr.f32.gmra.mrb[0].mxu0 %v427
    %v495 = vpop.f32.mrb[0].mxu0
    %v496 = vadd.f32 %v74, %v495
    %v497 = vpop.f32.mrb[0].mxu0
    %v498 = vadd.f32 %v78, %v497
    %499 = vdwg.mxu0
    %v500 = vadd.f32 %v204, %v496
    %v501 = vxor.u32 %v500, 2147483648
    %v502 = vmul.f32 %v501, 1.442695
    %v503 = vpow.pop %v502
    %v504 = vadd.f32 %v503, 1.0
    %v505 = vrcp.pop %v504
    %v506 = vmul.f32 1.0, %v505
    %v507 = vmul.f32 %v506, %v498
    %v508 = vadd.f32 %v206, %v507
    %v509 = vtanh.pop %v508
    %v510 = vsub.f32 1.0, %v506
    %512 = vrot.lane.b32.xlu0 %v509, 64
    %v513 = vpop.permute.xlu0 %512
    %v515 = vmul.f32 %v510, %v513
    %v516 = vmul.f32 %v506, %v423
    %v517 = vadd.f32 %v515, %v516
    %519 = vrot.lane.b32.xlu0 %v517, 64
    %v520 = vpop.permute.xlu0 %519
    %v521 = vsel %vm100, %v520, 0
    %523 = vmatprep.subr.mxu0 %v42
    %524 = vmatpush1.msra.mxu0 %v41
    %525 = vmatprep.subr.mxu0 %v44
    %526 = vmatpush1.msra.mxu0 %v43
    %527 = vmatprep.subr.mxu0 %v46
    %528 = vmatpush1.msra.mxu0 %v45
    %529 = vmatprep.subr.mxu0 %v48
    %530 = vmatpush1.msra.mxu0 %v47
    %531 = vmatprep.subr.mxu0 %v50
    %532 = vmatpush1.msra.mxu0 %v49
    %533 = vmatprep.subr.mxu0 %v52
    %534 = vmatpush1.msra.mxu0 %v51
    %535 = vmatprep.subr.mxu0 %v54
    %536 = vmatpush1.msra.mxu0 %v53
    %537 = vmatprep.subr.mxu0 %v56
    %538 = vmatpush1.msra.mxu0 %v55
    %539 = vmatprep.subr.mxu0 0.0
    %540 = vmatpush1.msra.mxu0 0.0
    %541 = vmatprep.subr.mxu0 0.0
    %542 = vmatpush1.msra.mxu0 0.0
    %543 = vmatprep.subr.mxu0 0.0
    %544 = vmatpush1.msra.mxu0 0.0
    %545 = vmatprep.subr.mxu0 0.0
    %546 = vmatpush1.msra.mxu0 0.0
    %547 = vmatprep.subr.mxu0 0.0
    %548 = vmatpush1.msra.mxu0 0.0
    %549 = vmatprep.subr.mxu0 0.0
    %550 = vmatpush1.msra.mxu0 0.0
    %551 = vmatprep.subr.mxu0 0.0
    %552 = vmatpush1.msra.mxu0 0.0
    %553 = vmatprep.subr.mxu0 0.0
    %554 = vmatpush1.msra.mxu0 0.0
    %555 = vmatprep.subr.mxu0 0.0
    %556 = vmatpush1.msra.mxu0 0.0
    %557 = vmatprep.subr.mxu0 0.0
    %558 = vmatpush1.msra.mxu0 0.0
    %559 = vmatprep.subr.mxu0 0.0
    %560 = vmatpush1.msra.mxu0 0.0
    %561 = vmatprep.subr.mxu0 0.0
    %562 = vmatpush1.msra.mxu0 0.0
    %563 = vmatprep.subr.mxu0 0.0
    %564 = vmatpush1.msra.mxu0 0.0
    %565 = vmatprep.subr.mxu0 0.0
    %566 = vmatpush1.msra.mxu0 0.0
    %567 = vmatprep.subr.mxu0 0.0
    %568 = vmatpush1.msra.mxu0 0.0
    %569 = vmatprep.subr.mxu0 0.0
    %570 = vmatpush1.msra.mxu0 0.0
    %571 = vmatprep.subr.mxu0 0.0
    %572 = vmatpush1.msra.mxu0 0.0
    %573 = vmatprep.subr.mxu0 0.0
    %574 = vmatpush1.msra.mxu0 0.0
    %575 = vmatprep.subr.mxu0 0.0
    %576 = vmatpush1.msra.mxu0 0.0
    %577 = vmatprep.subr.mxu0 0.0
    %578 = vmatpush1.msra.mxu0 0.0
    %579 = vmatprep.subr.mxu0 0.0
    %580 = vmatpush1.msra.mxu0 0.0
    %581 = vmatprep.subr.mxu0 0.0
    %582 = vmatpush1.msra.mxu0 0.0
    %583 = vmatprep.subr.mxu0 0.0
    %584 = vmatpush1.msra.mxu0 0.0
    %585 = vmatprep.subr.mxu0 0.0
    %586 = vmatpush1.msra.mxu0 0.0
    %587 = vmatprep.mubr.f32.mxu0 0.0
    %588 = vmatmul.mubr.f32.gmra.mrb[0].mxu0 %v521
    %v589 = vpop.f32.mrb[0].mxu0
    %v590 = vadd.f32 %v74, %v589
    %v591 = vpop.f32.mrb[0].mxu0
    %v592 = vadd.f32 %v78, %v591
    %593 = vdwg.mxu0
    %v594 = vadd.f32 %v210, %v590
    %v595 = vxor.u32 %v594, 2147483648
    %v596 = vmul.f32 %v595, 1.442695
    %v597 = vpow.pop %v596
    %v598 = vadd.f32 %v597, 1.0
    %v599 = vrcp.pop %v598
    %v600 = vmul.f32 1.0, %v599
    %v601 = vmul.f32 %v600, %v592
    %v602 = vadd.f32 %v212, %v601
    %v603 = vtanh.pop %v602
    %v604 = vsub.f32 1.0, %v600
    %606 = vrot.lane.b32.xlu0 %v603, 64
    %v607 = vpop.permute.xlu0 %606
    %v609 = vmul.f32 %v604, %v607
    %v610 = vmul.f32 %v600, %v517
    %v611 = vadd.f32 %v609, %v610
    %613 = vrot.lane.b32.xlu0 %v611, 64
    %v614 = vpop.permute.xlu0 %613
    %v615 = vsel %vm100, %v614, 0
    %617 = vmatprep.subr.mxu0 %v42
    %618 = vmatpush1.msra.mxu0 %v41
    %619 = vmatprep.subr.mxu0 %v44
    %620 = vmatpush1.msra.mxu0 %v43
    %621 = vmatprep.subr.mxu0 %v46
    %622 = vmatpush1.msra.mxu0 %v45
    %623 = vmatprep.subr.mxu0 %v48
    %624 = vmatpush1.msra.mxu0 %v47
    %625 = vmatprep.subr.mxu0 %v50
    %626 = vmatpush1.msra.mxu0 %v49
    %627 = vmatprep.subr.mxu0 %v52
    %628 = vmatpush1.msra.mxu0 %v51
    %629 = vmatprep.subr.mxu0 %v54
    %630 = vmatpush1.msra.mxu0 %v53
    %631 = vmatprep.subr.mxu0 %v56
    %632 = vmatpush1.msra.mxu0 %v55
    %633 = vmatprep.subr.mxu0 0.0
    %634 = vmatpush1.msra.mxu0 0.0
    %635 = vmatprep.subr.mxu0 0.0
    %636 = vmatpush1.msra.mxu0 0.0
    %637 = vmatprep.subr.mxu0 0.0
    %638 = vmatpush1.msra.mxu0 0.0
    %639 = vmatprep.subr.mxu0 0.0
    %640 = vmatpush1.msra.mxu0 0.0
    %641 = vmatprep.subr.mxu0 0.0
    %642 = vmatpush1.msra.mxu0 0.0
    %643 = vmatprep.subr.mxu0 0.0
    %644 = vmatpush1.msra.mxu0 0.0
    %645 = vmatprep.subr.mxu0 0.0
    %646 = vmatpush1.msra.mxu0 0.0
    %647 = vmatprep.subr.mxu0 0.0
    %648 = vmatpush1.msra.mxu0 0.0
    %649 = vmatprep.subr.mxu0 0.0
    %650 = vmatpush1.msra.mxu0 0.0
    %651 = vmatprep.subr.mxu0 0.0
    %652 = vmatpush1.msra.mxu0 0.0
    %653 = vmatprep.subr.mxu0 0.0
    %654 = vmatpush1.msra.mxu0 0.0
    %655 = vmatprep.subr.mxu0 0.0
    %656 = vmatpush1.msra.mxu0 0.0
    %657 = vmatprep.subr.mxu0 0.0
    %658 = vmatpush1.msra.mxu0 0.0
    %659 = vmatprep.subr.mxu0 0.0
    %660 = vmatpush1.msra.mxu0 0.0
    %661 = vmatprep.subr.mxu0 0.0
    %662 = vmatpush1.msra.mxu0 0.0
    %663 = vmatprep.subr.mxu0 0.0
    %664 = vmatpush1.msra.mxu0 0.0
    %665 = vmatprep.subr.mxu0 0.0
    %666 = vmatpush1.msra.mxu0 0.0
    %667 = vmatprep.subr.mxu0 0.0
    %668 = vmatpush1.msra.mxu0 0.0
    %669 = vmatprep.subr.mxu0 0.0
    %670 = vmatpush1.msra.mxu0 0.0
    %671 = vmatprep.subr.mxu0 0.0
    %672 = vmatpush1.msra.mxu0 0.0
    %673 = vmatprep.subr.mxu0 0.0
    %674 = vmatpush1.msra.mxu0 0.0
    %675 = vmatprep.subr.mxu0 0.0
    %676 = vmatpush1.msra.mxu0 0.0
    %677 = vmatprep.subr.mxu0 0.0
    %678 = vmatpush1.msra.mxu0 0.0
    %679 = vmatprep.subr.mxu0 0.0
    %680 = vmatpush1.msra.mxu0 0.0
    %681 = vmatprep.mubr.f32.mxu0 0.0
    %682 = vmatmul.mubr.f32.gmra.mrb[0].mxu0 %v615
    %v683 = vpop.f32.mrb[0].mxu0
    %v684 = vadd.f32 %v74, %v683
    %v685 = vpop.f32.mrb[0].mxu0
    %v686 = vadd.f32 %v78, %v685
    %687 = vdwg.mxu0
    %v688 = vadd.f32 %v216, %v684
    %v689 = vxor.u32 %v688, 2147483648
    %v690 = vmul.f32 %v689, 1.442695
    %v691 = vpow.pop %v690
    %v692 = vadd.f32 %v691, 1.0
    %v693 = vrcp.pop %v692
    %v694 = vmul.f32 1.0, %v693
    %v695 = vmul.f32 %v694, %v686
    %v696 = vadd.f32 %v218, %v695
    %v697 = vtanh.pop %v696
    %v698 = vsub.f32 1.0, %v694
    %700 = vrot.lane.b32.xlu0 %v697, 64
    %v701 = vpop.permute.xlu0 %700
    %v703 = vmul.f32 %v698, %v701
    %v704 = vmul.f32 %v694, %v611
    %v705 = vadd.f32 %v703, %v704
    %707 = vrot.lane.b32.xlu0 %v705, 64
    %v708 = vpop.permute.xlu0 %707
    %v709 = vsel %vm100, %v708, 0
    %711 = vmatprep.subr.mxu0 %v42
    %712 = vmatpush1.msra.mxu0 %v41
    %713 = vmatprep.subr.mxu0 %v44
    %714 = vmatpush1.msra.mxu0 %v43
    %715 = vmatprep.subr.mxu0 %v46
    %716 = vmatpush1.msra.mxu0 %v45
    %717 = vmatprep.subr.mxu0 %v48
    %718 = vmatpush1.msra.mxu0 %v47
    %719 = vmatprep.subr.mxu0 %v50
    %720 = vmatpush1.msra.mxu0 %v49
    %721 = vmatprep.subr.mxu0 %v52
    %722 = vmatpush1.msra.mxu0 %v51
    %723 = vmatprep.subr.mxu0 %v54
    %724 = vmatpush1.msra.mxu0 %v53
    %725 = vmatprep.subr.mxu0 %v56
    %726 = vmatpush1.msra.mxu0 %v55
    %727 = vmatprep.subr.mxu0 0.0
    %728 = vmatpush1.msra.mxu0 0.0
    %729 = vmatprep.subr.mxu0 0.0
    %730 = vmatpush1.msra.mxu0 0.0
    %731 = vmatprep.subr.mxu0 0.0
    %732 = vmatpush1.msra.mxu0 0.0
    %733 = vmatprep.subr.mxu0 0.0
    %734 = vmatpush1.msra.mxu0 0.0
    %735 = vmatprep.subr.mxu0 0.0
    %736 = vmatpush1.msra.mxu0 0.0
    %737 = vmatprep.subr.mxu0 0.0
    %738 = vmatpush1.msra.mxu0 0.0
    %739 = vmatprep.subr.mxu0 0.0
    %740 = vmatpush1.msra.mxu0 0.0
    %741 = vmatprep.subr.mxu0 0.0
    %742 = vmatpush1.msra.mxu0 0.0
    %743 = vmatprep.subr.mxu0 0.0
    %744 = vmatpush1.msra.mxu0 0.0
    %745 = vmatprep.subr.mxu0 0.0
    %746 = vmatpush1.msra.mxu0 0.0
    %747 = vmatprep.subr.mxu0 0.0
    %748 = vmatpush1.msra.mxu0 0.0
    %749 = vmatprep.subr.mxu0 0.0
    %750 = vmatpush1.msra.mxu0 0.0
    %751 = vmatprep.subr.mxu0 0.0
    %752 = vmatpush1.msra.mxu0 0.0
    %753 = vmatprep.subr.mxu0 0.0
    %754 = vmatpush1.msra.mxu0 0.0
    %755 = vmatprep.subr.mxu0 0.0
    %756 = vmatpush1.msra.mxu0 0.0
    %757 = vmatprep.subr.mxu0 0.0
    %758 = vmatpush1.msra.mxu0 0.0
    %759 = vmatprep.subr.mxu0 0.0
    %760 = vmatpush1.msra.mxu0 0.0
    %761 = vmatprep.subr.mxu0 0.0
    %762 = vmatpush1.msra.mxu0 0.0
    %763 = vmatprep.subr.mxu0 0.0
    %764 = vmatpush1.msra.mxu0 0.0
    %765 = vmatprep.subr.mxu0 0.0
    %766 = vmatpush1.msra.mxu0 0.0
    %767 = vmatprep.subr.mxu0 0.0
    %768 = vmatpush1.msra.mxu0 0.0
    %769 = vmatprep.subr.mxu0 0.0
    %770 = vmatpush1.msra.mxu0 0.0
    %771 = vmatprep.subr.mxu0 0.0
    %772 = vmatpush1.msra.mxu0 0.0
    %773 = vmatprep.subr.mxu0 0.0
    %774 = vmatpush1.msra.mxu0 0.0
    %775 = vmatprep.mubr.f32.mxu0 0.0
    %776 = vmatmul.mubr.f32.gmra.mrb[0].mxu0 %v709
    %v777 = vpop.f32.mrb[0].mxu0
    %v778 = vadd.f32 %v74, %v777
    %v779 = vpop.f32.mrb[0].mxu0
    %v780 = vadd.f32 %v78, %v779
    %781 = vdwg.mxu0
    %v782 = vadd.f32 %v222, %v778
    %v783 = vxor.u32 %v782, 2147483648
    %v784 = vmul.f32 %v783, 1.442695
    %v785 = vpow.pop %v784
    %v786 = vadd.f32 %v785, 1.0
    %v787 = vrcp.pop %v786
    %v788 = vmul.f32 1.0, %v787
    %v789 = vmul.f32 %v788, %v780
    %v790 = vadd.f32 %v224, %v789
    %v791 = vtanh.pop %v790
    %v792 = vsub.f32 1.0, %v788
    %794 = vrot.lane.b32.xlu0 %v791, 64
    %v795 = vpop.permute.xlu0 %794
    %v797 = vmul.f32 %v792, %v795
    %v798 = vmul.f32 %v788, %v705
    %v799 = vadd.f32 %v797, %v798
    %801 = vrot.lane.b32.xlu0 %v799, 64
    %v802 = vpop.permute.xlu0 %801
    %v803 = vsel %vm100, %v802, 0
    %805 = vmatprep.subr.mxu0 %v42
    %806 = vmatpush1.msra.mxu0 %v41
    %807 = vmatprep.subr.mxu0 %v44
    %808 = vmatpush1.msra.mxu0 %v43
    %809 = vmatprep.subr.mxu0 %v46
    %810 = vmatpush1.msra.mxu0 %v45
    %811 = vmatprep.subr.mxu0 %v48
    %812 = vmatpush1.msra.mxu0 %v47
    %813 = vmatprep.subr.mxu0 %v50
    %814 = vmatpush1.msra.mxu0 %v49
    %815 = vmatprep.subr.mxu0 %v52
    %816 = vmatpush1.msra.mxu0 %v51
    %817 = vmatprep.subr.mxu0 %v54
    %818 = vmatpush1.msra.mxu0 %v53
    %819 = vmatprep.subr.mxu0 %v56
    %820 = vmatpush1.msra.mxu0 %v55
    %821 = vmatprep.subr.mxu0 0.0
    %822 = vmatpush1.msra.mxu0 0.0
    %823 = vmatprep.subr.mxu0 0.0
    %824 = vmatpush1.msra.mxu0 0.0
    %825 = vmatprep.subr.mxu0 0.0
    %826 = vmatpush1.msra.mxu0 0.0
    %827 = vmatprep.subr.mxu0 0.0
    %828 = vmatpush1.msra.mxu0 0.0
    %829 = vmatprep.subr.mxu0 0.0
    %830 = vmatpush1.msra.mxu0 0.0
    %831 = vmatprep.subr.mxu0 0.0
    %832 = vmatpush1.msra.mxu0 0.0
    %833 = vmatprep.subr.mxu0 0.0
    %834 = vmatpush1.msra.mxu0 0.0
    %835 = vmatprep.subr.mxu0 0.0
    %836 = vmatpush1.msra.mxu0 0.0
    %837 = vmatprep.subr.mxu0 0.0
    %838 = vmatpush1.msra.mxu0 0.0
    %839 = vmatprep.subr.mxu0 0.0
    %840 = vmatpush1.msra.mxu0 0.0
    %841 = vmatprep.subr.mxu0 0.0
    %842 = vmatpush1.msra.mxu0 0.0
    %843 = vmatprep.subr.mxu0 0.0
    %844 = vmatpush1.msra.mxu0 0.0
    %845 = vmatprep.subr.mxu0 0.0
    %846 = vmatpush1.msra.mxu0 0.0
    %847 = vmatprep.subr.mxu0 0.0
    %848 = vmatpush1.msra.mxu0 0.0
    %849 = vmatprep.subr.mxu0 0.0
    %850 = vmatpush1.msra.mxu0 0.0
    %851 = vmatprep.subr.mxu0 0.0
    %852 = vmatpush1.msra.mxu0 0.0
    %853 = vmatprep.subr.mxu0 0.0
    %854 = vmatpush1.msra.mxu0 0.0
    %855 = vmatprep.subr.mxu0 0.0
    %856 = vmatpush1.msra.mxu0 0.0
    %857 = vmatprep.subr.mxu0 0.0
    %858 = vmatpush1.msra.mxu0 0.0
    %859 = vmatprep.subr.mxu0 0.0
    %860 = vmatpush1.msra.mxu0 0.0
    %861 = vmatprep.subr.mxu0 0.0
    %862 = vmatpush1.msra.mxu0 0.0
    %863 = vmatprep.subr.mxu0 0.0
    %864 = vmatpush1.msra.mxu0 0.0
    %865 = vmatprep.subr.mxu0 0.0
    %866 = vmatpush1.msra.mxu0 0.0
    %867 = vmatprep.subr.mxu0 0.0
    %868 = vmatpush1.msra.mxu0 0.0
    %869 = vmatprep.mubr.f32.mxu0 0.0
    %870 = vmatmul.mubr.f32.gmra.mrb[0].mxu0 %v803
    %v871 = vpop.f32.mrb[0].mxu0
    %v872 = vadd.f32 %v74, %v871
    %v873 = vpop.f32.mrb[0].mxu0
    %v874 = vadd.f32 %v78, %v873
    %875 = vdwg.mxu0
    %v876 = vadd.f32 %v228, %v872
    %v877 = vxor.u32 %v876, 2147483648
    %v878 = vmul.f32 %v877, 1.442695
    %v879 = vpow.pop %v878
    %v880 = vadd.f32 %v879, 1.0
    %v881 = vrcp.pop %v880
    %v882 = vmul.f32 1.0, %v881
    %v883 = vmul.f32 %v882, %v874
    %v884 = vadd.f32 %v230, %v883
    %v885 = vtanh.pop %v884
    %v886 = vsub.f32 1.0, %v882
    %888 = vrot.lane.b32.xlu0 %v885, 64
    %v889 = vpop.permute.xlu0 %888
    %v891 = vmul.f32 %v886, %v889
    %v892 = vmul.f32 %v882, %v799
    %v893 = vadd.f32 %v891, %v892
    %895 = vrot.lane.b32.xlu0 %v893, 64
    %v896 = vpop.permute.xlu0 %895
    %v897 = vsel %vm100, %v896, 0
    %899 = vmatprep.subr.mxu0 %v42
    %900 = vmatpush1.msra.mxu0 %v41
    %901 = vmatprep.subr.mxu0 %v44
    %902 = vmatpush1.msra.mxu0 %v43
    %903 = vmatprep.subr.mxu0 %v46
    %904 = vmatpush1.msra.mxu0 %v45
    %905 = vmatprep.subr.mxu0 %v48
    %906 = vmatpush1.msra.mxu0 %v47
    %907 = vmatprep.subr.mxu0 %v50
    %908 = vmatpush1.msra.mxu0 %v49
    %909 = vmatprep.subr.mxu0 %v52
    %910 = vmatpush1.msra.mxu0 %v51
    %911 = vmatprep.subr.mxu0 %v54
    %912 = vmatpush1.msra.mxu0 %v53
    %913 = vmatprep.subr.mxu0 %v56
    %914 = vmatpush1.msra.mxu0 %v55
    %915 = vmatprep.subr.mxu0 0.0
    %916 = vmatpush1.msra.mxu0 0.0
    %917 = vmatprep.subr.mxu0 0.0
    %918 = vmatpush1.msra.mxu0 0.0
    %919 = vmatprep.subr.mxu0 0.0
    %920 = vmatpush1.msra.mxu0 0.0
    %921 = vmatprep.subr.mxu0 0.0
    %922 = vmatpush1.msra.mxu0 0.0
    %923 = vmatprep.subr.mxu0 0.0
    %924 = vmatpush1.msra.mxu0 0.0
    %925 = vmatprep.subr.mxu0 0.0
    %926 = vmatpush1.msra.mxu0 0.0
    %927 = vmatprep.subr.mxu0 0.0
    %928 = vmatpush1.msra.mxu0 0.0
    %929 = vmatprep.subr.mxu0 0.0
    %930 = vmatpush1.msra.mxu0 0.0
    %931 = vmatprep.subr.mxu0 0.0
    %932 = vmatpush1.msra.mxu0 0.0
    %933 = vmatprep.subr.mxu0 0.0
    %934 = vmatpush1.msra.mxu0 0.0
    %935 = vmatprep.subr.mxu0 0.0
    %936 = vmatpush1.msra.mxu0 0.0
    %937 = vmatprep.subr.mxu0 0.0
    %938 = vmatpush1.msra.mxu0 0.0
    %939 = vmatprep.subr.mxu0 0.0
    %940 = vmatpush1.msra.mxu0 0.0
    %941 = vmatprep.subr.mxu0 0.0
    %942 = vmatpush1.msra.mxu0 0.0
    %943 = vmatprep.subr.mxu0 0.0
    %944 = vmatpush1.msra.mxu0 0.0
    %945 = vmatprep.subr.mxu0 0.0
    %946 = vmatpush1.msra.mxu0 0.0
    %947 = vmatprep.subr.mxu0 0.0
    %948 = vmatpush1.msra.mxu0 0.0
    %949 = vmatprep.subr.mxu0 0.0
    %950 = vmatpush1.msra.mxu0 0.0
    %951 = vmatprep.subr.mxu0 0.0
    %952 = vmatpush1.msra.mxu0 0.0
    %953 = vmatprep.subr.mxu0 0.0
    %954 = vmatpush1.msra.mxu0 0.0
    %955 = vmatprep.subr.mxu0 0.0
    %956 = vmatpush1.msra.mxu0 0.0
    %957 = vmatprep.subr.mxu0 0.0
    %958 = vmatpush1.msra.mxu0 0.0
    %959 = vmatprep.subr.mxu0 0.0
    %960 = vmatpush1.msra.mxu0 0.0
    %961 = vmatprep.subr.mxu0 0.0
    %962 = vmatpush1.msra.mxu0 0.0
    %963 = vmatprep.mubr.f32.mxu0 0.0
    %964 = vmatmul.mubr.f32.gmra.mrb[0].mxu0 %v897
    %v965 = vpop.f32.mrb[0].mxu0
    %v966 = vadd.f32 %v74, %v965
    %v967 = vpop.f32.mrb[0].mxu0
    %v968 = vadd.f32 %v78, %v967
    %969 = vdwg.mxu0
    %v970 = vadd.f32 %v234, %v966
    %v971 = vxor.u32 %v970, 2147483648
    %v972 = vmul.f32 %v971, 1.442695
    %v973 = vpow.pop %v972
    %v974 = vadd.f32 %v973, 1.0
    %v975 = vrcp.pop %v974
    %v976 = vmul.f32 1.0, %v975
    %v977 = vmul.f32 %v976, %v968
    %v978 = vadd.f32 %v236, %v977
    %v979 = vtanh.pop %v978
    %v980 = vsub.f32 1.0, %v976
    %982 = vrot.lane.b32.xlu0 %v979, 64
    %v983 = vpop.permute.xlu0 %982
    %v985 = vmul.f32 %v980, %v983
    %v986 = vmul.f32 %v976, %v893
    %v987 = vadd.f32 %v985, %v986
    %v988 = vlaneseq
    %v989 = vand.u32 %v988, 127
    %vm990 = vcmp.lt.s32.totalorder %v989, 32
    %992 = vrot.lane.b32.xlu0 %v987, 64
    %v993 = vpop.permute.xlu0 %992
    %v994 = vsel %vm100, %v993, 0
    %996 = vmatprep.subr.mxu0 0.0
    %997 = vmatpush1.msra.mxu0 %v61
    %998 = vmatprep.subr.mxu0 0.0
    %999 = vmatpush1.msra.mxu0 %v62
    %1000 = vmatprep.subr.mxu0 0.0
    %1001 = vmatpush1.msra.mxu0 %v63
    %1002 = vmatprep.subr.mxu0 0.0
    %1003 = vmatpush1.msra.mxu0 %v64
    %1004 = vmatprep.subr.mxu0 0.0
    %1005 = vmatpush1.msra.mxu0 %v65
    %1006 = vmatprep.subr.mxu0 0.0
    %1007 = vmatpush1.msra.mxu0 %v66
    %1008 = vmatprep.subr.mxu0 0.0
    %1009 = vmatpush1.msra.mxu0 %v67
    %1010 = vmatprep.subr.mxu0 0.0
    %1011 = vmatpush1.msra.mxu0 %v68
    %1012 = vmatprep.subr.mxu0 0.0
    %1013 = vmatpush1.msra.mxu0 0.0
    %1014 = vmatprep.subr.mxu0 0.0
    %1015 = vmatpush1.msra.mxu0 0.0
    %1016 = vmatprep.subr.mxu0 0.0
    %1017 = vmatpush1.msra.mxu0 0.0
    %1018 = vmatprep.subr.mxu0 0.0
    %1019 = vmatpush1.msra.mxu0 0.0
    %1020 = vmatprep.subr.mxu0 0.0
    %1021 = vmatpush1.msra.mxu0 0.0
    %1022 = vmatprep.subr.mxu0 0.0
    %1023 = vmatpush1.msra.mxu0 0.0
    %1024 = vmatprep.subr.mxu0 0.0
    %1025 = vmatpush1.msra.mxu0 0.0
    %1026 = vmatprep.subr.mxu0 0.0
    %1027 = vmatpush1.msra.mxu0 0.0
    %1028 = vmatprep.subr.mxu0 0.0
    %1029 = vmatpush1.msra.mxu0 0.0
    %1030 = vmatprep.subr.mxu0 0.0
    %1031 = vmatpush1.msra.mxu0 0.0
    %1032 = vmatprep.subr.mxu0 0.0
    %1033 = vmatpush1.msra.mxu0 0.0
    %1034 = vmatprep.subr.mxu0 0.0
    %1035 = vmatpush1.msra.mxu0 0.0
    %1036 = vmatprep.subr.mxu0 0.0
    %1037 = vmatpush1.msra.mxu0 0.0
    %1038 = vmatprep.subr.mxu0 0.0
    %1039 = vmatpush1.msra.mxu0 0.0
    %1040 = vmatprep.subr.mxu0 0.0
    %1041 = vmatpush1.msra.mxu0 0.0
    %1042 = vmatprep.subr.mxu0 0.0
    %1043 = vmatpush1.msra.mxu0 0.0
    %1044 = vmatprep.subr.mxu0 0.0
    %1045 = vmatpush1.msra.mxu0 0.0
    %1046 = vmatprep.subr.mxu0 0.0
    %1047 = vmatpush1.msra.mxu0 0.0
    %1048 = vmatprep.subr.mxu0 0.0
    %1049 = vmatpush1.msra.mxu0 0.0
    %1050 = vmatprep.subr.mxu0 0.0
    %1051 = vmatpush1.msra.mxu0 0.0
    %1052 = vmatprep.subr.mxu0 0.0
    %1053 = vmatpush1.msra.mxu0 0.0
    %1054 = vmatprep.subr.mxu0 0.0
    %1055 = vmatpush1.msra.mxu0 0.0
    %1056 = vmatprep.subr.mxu0 0.0
    %1057 = vmatpush1.msra.mxu0 0.0
    %1058 = vmatprep.subr.mxu0 0.0
    %1059 = vmatpush1.msra.mxu0 0.0
    %1060 = vmatprep.mubr.f32.mxu0 0.0
    %1061 = vmatmul.mubr.f32.gmra.mrb[0].mxu0 %v994
    %v1062 = vpop.f32.mrb[0].mxu0
    %v1063 = vadd.f32 %v69, %v1062
    %v1064 = vpop.f32.mrb[0].mxu0
    %1065 = vdwg.mxu0
    %1067 = vset.pattern.permute.xlu0 0
    %1068 = vperm.xlu0 %1067, %v1063
    %v1069 = vpop.permute.xlu0 %1068
    %1071 = vset.pattern.permute.xlu0 7
    %1072 = vperm.xlu0 %1071, %v1063
    %v1073 = vpop.permute.xlu0 %1072
    %v1075 = vsel %vm990, %v1069, %v1073
    %v1077 = vmul.f32 %v1075, %v332
    %1078 = vset.pattern.permute.xlu0 1
    %1079 = vperm.xlu0 %1078, %v1063
    %v1080 = vpop.permute.xlu0 %1079
    %1082 = vset.pattern.permute.xlu0 6
    %1083 = vperm.xlu0 %1082, %v1063
    %v1084 = vpop.permute.xlu0 %1083
    %v1086 = vsel %vm990, %v1080, %v1084
    %v1088 = vmul.f32 %v1086, %v426
    %1089 = vset.pattern.permute.xlu0 2
    %1090 = vperm.xlu0 %1089, %v1063
    %v1091 = vpop.permute.xlu0 %1090
    %1093 = vset.pattern.permute.xlu0 5
    %1094 = vperm.xlu0 %1093, %v1063
    %v1095 = vpop.permute.xlu0 %1094
    %v1097 = vsel %vm990, %v1091, %v1095
    %v1099 = vmul.f32 %v1097, %v520
    %1100 = vset.pattern.permute.xlu0 3
    %1101 = vperm.xlu0 %1100, %v1063
    %v1102 = vpop.permute.xlu0 %1101
    %1104 = vset.pattern.permute.xlu0 4
    %1105 = vperm.xlu0 %1104, %v1063
    %v1106 = vpop.permute.xlu0 %1105
    %v1108 = vsel %vm990, %v1102, %v1106
    %v1110 = vmul.f32 %v1108, %v614
    %v1111 = vsel %vm990, %v1106, %v1102
    %v1113 = vmul.f32 %v1111, %v708
    %v1114 = vsel %vm990, %v1095, %v1091
    %v1116 = vmul.f32 %v1114, %v802
    %v1117 = vsel %vm990, %v1084, %v1080
    %v1119 = vmul.f32 %v1117, %v896
    %v1120 = vsel %vm990, %v1073, %v1069
    %v1122 = vmul.f32 %v1120, %v993
    %v1123 = vadd.f32 %v1077, %v1088
    %v1124 = vadd.f32 %v1099, %v1110
    %v1125 = vadd.f32 %v1113, %v1116
    %v1126 = vadd.f32 %v1119, %v1122
    %v1127 = vadd.f32 %v1123, %v1124
    %v1128 = vadd.f32 %v1125, %v1126
    %v1129 = vadd.f32 %v1127, %v1128
    %v1131 = vsel %vm100, %v1129, 0
    %1133 = vmatprep.subr.mxu0 0.0
    %1134 = vmatpush1.msra.mxu0 %v61
    %1135 = vmatprep.subr.mxu0 0.0
    %1136 = vmatpush1.msra.mxu0 %v62
    %1137 = vmatprep.subr.mxu0 0.0
    %1138 = vmatpush1.msra.mxu0 %v63
    %1139 = vmatprep.subr.mxu0 0.0
    %1140 = vmatpush1.msra.mxu0 %v64
    %1141 = vmatprep.subr.mxu0 0.0
    %1142 = vmatpush1.msra.mxu0 %v65
    %1143 = vmatprep.subr.mxu0 0.0
    %1144 = vmatpush1.msra.mxu0 %v66
    %1145 = vmatprep.subr.mxu0 0.0
    %1146 = vmatpush1.msra.mxu0 %v67
    %1147 = vmatprep.subr.mxu0 0.0
    %1148 = vmatpush1.msra.mxu0 %v68
    %1149 = vmatprep.subr.mxu0 0.0
    %1150 = vmatpush1.msra.mxu0 0.0
    %1151 = vmatprep.subr.mxu0 0.0
    %1152 = vmatpush1.msra.mxu0 0.0
    %1153 = vmatprep.subr.mxu0 0.0
    %1154 = vmatpush1.msra.mxu0 0.0
    %1155 = vmatprep.subr.mxu0 0.0
    %1156 = vmatpush1.msra.mxu0 0.0
    %1157 = vmatprep.subr.mxu0 0.0
    %1158 = vmatpush1.msra.mxu0 0.0
    %1159 = vmatprep.subr.mxu0 0.0
    %1160 = vmatpush1.msra.mxu0 0.0
    %1161 = vmatprep.subr.mxu0 0.0
    %1162 = vmatpush1.msra.mxu0 0.0
    %1163 = vmatprep.subr.mxu0 0.0
    %1164 = vmatpush1.msra.mxu0 0.0
    %1165 = vmatprep.subr.mxu0 0.0
    %1166 = vmatpush1.msra.mxu0 0.0
    %1167 = vmatprep.subr.mxu0 0.0
    %1168 = vmatpush1.msra.mxu0 0.0
    %1169 = vmatprep.subr.mxu0 0.0
    %1170 = vmatpush1.msra.mxu0 0.0
    %1171 = vmatprep.subr.mxu0 0.0
    %1172 = vmatpush1.msra.mxu0 0.0
    %1173 = vmatprep.subr.mxu0 0.0
    %1174 = vmatpush1.msra.mxu0 0.0
    %1175 = vmatprep.subr.mxu0 0.0
    %1176 = vmatpush1.msra.mxu0 0.0
    %1177 = vmatprep.subr.mxu0 0.0
    %1178 = vmatpush1.msra.mxu0 0.0
    %1179 = vmatprep.subr.mxu0 0.0
    %1180 = vmatpush1.msra.mxu0 0.0
    %1181 = vmatprep.subr.mxu0 0.0
    %1182 = vmatpush1.msra.mxu0 0.0
    %1183 = vmatprep.subr.mxu0 0.0
    %1184 = vmatpush1.msra.mxu0 0.0
    %1185 = vmatprep.subr.mxu0 0.0
    %1186 = vmatpush1.msra.mxu0 0.0
    %1187 = vmatprep.subr.mxu0 0.0
    %1188 = vmatpush1.msra.mxu0 0.0
    %1189 = vmatprep.subr.mxu0 0.0
    %1190 = vmatpush1.msra.mxu0 0.0
    %1191 = vmatprep.subr.mxu0 0.0
    %1192 = vmatpush1.msra.mxu0 0.0
    %1193 = vmatprep.subr.mxu0 0.0
    %1194 = vmatpush1.msra.mxu0 0.0
    %1195 = vmatprep.subr.mxu0 0.0
    %1196 = vmatpush1.msra.mxu0 0.0
    %1197 = vmatprep.mubr.f32.mxu0 0.0
    %1198 = vmatmul.mubr.f32.gmra.mrb[0].mxu0 %v1131
    %v1199 = vpop.f32.mrb[0].mxu0
    %v1200 = vadd.f32 %v69, %v1199
    %v1201 = vpop.f32.mrb[0].mxu0
    %1202 = vdwg.mxu0
    %vm1203 = vcmask 64512
    %v1204 = vsel %vm1203, %v1200, -inf
    %1205 = vmax.xlane.f32.xlu0 %v1204
    %v1206 = vpop.xlane.xlu0 %1205
    %v1207 = vsub.f32 %v1200, %v1206
    %v1208 = vmul.f32 %v1207, 1.442695
    %v1209 = vpow.pop %v1208
    %v1210 = vsel %vm1203, %v1209, 0.0
    %1211 = vadd.xlane.f32.xlu0 %v1210
    %v1212 = vpop.xlane.xlu0 %1211
    %v1213 = vrcp.pop %v1212
    %v1214 = vmul.f32 %v1209, %v1213
    %1216 = vset.pattern.permute.xlu0 0
    %1217 = vperm.xlu0 %1216, %v1214
    %v1218 = vpop.permute.xlu0 %1217
    %1220 = vset.pattern.permute.xlu0 7
    %1221 = vperm.xlu0 %1220, %v1214
    %v1222 = vpop.permute.xlu0 %1221
    %v1224 = vsel %vm990, %v1218, %v1222
    %v1225 = vmul.f32 %v1224, %v332
    %1226 = vset.pattern.permute.xlu0 1
    %1227 = vperm.xlu0 %1226, %v1214
    %v1228 = vpop.permute.xlu0 %1227
    %1230 = vset.pattern.permute.xlu0 6
    %1231 = vperm.xlu0 %1230, %v1214
    %v1232 = vpop.permute.xlu0 %1231
    %v1234 = vsel %vm990, %v1228, %v1232
    %v1235 = vmul.f32 %v1234, %v426
    %1236 = vset.pattern.permute.xlu0 2
    %1237 = vperm.xlu0 %1236, %v1214
    %v1238 = vpop.permute.xlu0 %1237
    %1240 = vset.pattern.permute.xlu0 5
    %1241 = vperm.xlu0 %1240, %v1214
    %v1242 = vpop.permute.xlu0 %1241
    %v1244 = vsel %vm990, %v1238, %v1242
    %v1245 = vmul.f32 %v1244, %v520
    %1246 = vset.pattern.permute.xlu0 3
    %1247 = vperm.xlu0 %1246, %v1214
    %v1248 = vpop.permute.xlu0 %1247
    %1250 = vset.pattern.permute.xlu0 4
    %1251 = vperm.xlu0 %1250, %v1214
    %v1252 = vpop.permute.xlu0 %1251
    %v1254 = vsel %vm990, %v1248, %v1252
    %v1255 = vmul.f32 %v1254, %v614
    %v1256 = vsel %vm990, %v1252, %v1248
    %v1257 = vmul.f32 %v1256, %v708
    %v1258 = vsel %vm990, %v1242, %v1238
    %v1259 = vmul.f32 %v1258, %v802
    %v1260 = vsel %vm990, %v1232, %v1228
    %v1261 = vmul.f32 %v1260, %v896
    %v1262 = vsel %vm990, %v1222, %v1218
    %v1263 = vmul.f32 %v1262, %v993
    %v1264 = vadd.f32 %v1225, %v1235
    %v1265 = vadd.f32 %v1245, %v1255
    %v1266 = vadd.f32 %v1257, %v1259
    %v1267 = vadd.f32 %v1261, %v1263
    %v1268 = vadd.f32 %v1264, %v1265
    %v1269 = vadd.f32 %v1266, %v1267
    %v1270 = vadd.f32 %v1268, %v1269
    %1279 = vrot.lane.b32.xlu0 %v61, 120
    %v1280 = vpop.permute.xlu0 %1279
    %1281 = vrot.lane.b32.xlu0 %v62, 120
    %v1282 = vpop.permute.xlu0 %1281
    %1283 = vrot.lane.b32.xlu0 %v63, 120
    %v1284 = vpop.permute.xlu0 %1283
    %1285 = vrot.lane.b32.xlu0 %v64, 120
    %v1286 = vpop.permute.xlu0 %1285
    %1287 = vrot.lane.b32.xlu0 %v65, 120
    %v1288 = vpop.permute.xlu0 %1287
    %1289 = vrot.lane.b32.xlu0 %v66, 120
    %v1290 = vpop.permute.xlu0 %1289
    %1291 = vrot.lane.b32.xlu0 %v67, 120
    %v1292 = vpop.permute.xlu0 %1291
    %1293 = vrot.lane.b32.xlu0 %v68, 120
    %v1294 = vpop.permute.xlu0 %1293
    %1304 = vrot.lane.b32.xlu0 %v69, 120
    %v1305 = vpop.permute.xlu0 %1304
    %v1308 = vsel %vm100, %v1270, 0
    %1310 = vmatprep.subr.mxu0 0.0
    %1311 = vmatpush1.msra.mxu0 %v1280
    %1312 = vmatprep.subr.mxu0 0.0
    %1313 = vmatpush1.msra.mxu0 %v1282
    %1314 = vmatprep.subr.mxu0 0.0
    %1315 = vmatpush1.msra.mxu0 %v1284
    %1316 = vmatprep.subr.mxu0 0.0
    %1317 = vmatpush1.msra.mxu0 %v1286
    %1318 = vmatprep.subr.mxu0 0.0
    %1319 = vmatpush1.msra.mxu0 %v1288
    %1320 = vmatprep.subr.mxu0 0.0
    %1321 = vmatpush1.msra.mxu0 %v1290
    %1322 = vmatprep.subr.mxu0 0.0
    %1323 = vmatpush1.msra.mxu0 %v1292
    %1324 = vmatprep.subr.mxu0 0.0
    %1325 = vmatpush1.msra.mxu0 %v1294
    %1326 = vmatprep.subr.mxu0 0.0
    %1327 = vmatpush1.msra.mxu0 0.0
    %1328 = vmatprep.subr.mxu0 0.0
    %1329 = vmatpush1.msra.mxu0 0.0
    %1330 = vmatprep.subr.mxu0 0.0
    %1331 = vmatpush1.msra.mxu0 0.0
    %1332 = vmatprep.subr.mxu0 0.0
    %1333 = vmatpush1.msra.mxu0 0.0
    %1334 = vmatprep.subr.mxu0 0.0
    %1335 = vmatpush1.msra.mxu0 0.0
    %1336 = vmatprep.subr.mxu0 0.0
    %1337 = vmatpush1.msra.mxu0 0.0
    %1338 = vmatprep.subr.mxu0 0.0
    %1339 = vmatpush1.msra.mxu0 0.0
    %1340 = vmatprep.subr.mxu0 0.0
    %1341 = vmatpush1.msra.mxu0 0.0
    %1342 = vmatprep.subr.mxu0 0.0
    %1343 = vmatpush1.msra.mxu0 0.0
    %1344 = vmatprep.subr.mxu0 0.0
    %1345 = vmatpush1.msra.mxu0 0.0
    %1346 = vmatprep.subr.mxu0 0.0
    %1347 = vmatpush1.msra.mxu0 0.0
    %1348 = vmatprep.subr.mxu0 0.0
    %1349 = vmatpush1.msra.mxu0 0.0
    %1350 = vmatprep.subr.mxu0 0.0
    %1351 = vmatpush1.msra.mxu0 0.0
    %1352 = vmatprep.subr.mxu0 0.0
    %1353 = vmatpush1.msra.mxu0 0.0
    %1354 = vmatprep.subr.mxu0 0.0
    %1355 = vmatpush1.msra.mxu0 0.0
    %1356 = vmatprep.subr.mxu0 0.0
    %1357 = vmatpush1.msra.mxu0 0.0
    %1358 = vmatprep.subr.mxu0 0.0
    %1359 = vmatpush1.msra.mxu0 0.0
    %1360 = vmatprep.subr.mxu0 0.0
    %1361 = vmatpush1.msra.mxu0 0.0
    %1362 = vmatprep.subr.mxu0 0.0
    %1363 = vmatpush1.msra.mxu0 0.0
    %1364 = vmatprep.subr.mxu0 0.0
    %1365 = vmatpush1.msra.mxu0 0.0
    %1366 = vmatprep.subr.mxu0 0.0
    %1367 = vmatpush1.msra.mxu0 0.0
    %1368 = vmatprep.subr.mxu0 0.0
    %1369 = vmatpush1.msra.mxu0 0.0
    %1370 = vmatprep.subr.mxu0 0.0
    %1371 = vmatpush1.msra.mxu0 0.0
    %1372 = vmatprep.subr.mxu0 0.0
    %1373 = vmatpush1.msra.mxu0 0.0
    %1374 = vmatprep.mubr.f32.mxu0 0.0
    %1375 = vmatmul.mubr.f32.gmra.mrb[0].mxu0 %v1308
    %v1376 = vpop.f32.mrb[0].mxu0
    %v1377 = vadd.f32 %v1305, %v1376
    %v1378 = vpop.f32.mrb[0].mxu0
    %1379 = vdwg.mxu0
    %v1380 = vmax.f32 %v1377, 0.0
    %1381 = vrot.lane.b32.xlu0 %v61, 88
    %v1382 = vpop.permute.xlu0 %1381
    %1383 = vrot.lane.b32.xlu0 %v62, 88
    %v1384 = vpop.permute.xlu0 %1383
    %1385 = vrot.lane.b32.xlu0 %v63, 88
    %v1386 = vpop.permute.xlu0 %1385
    %1387 = vrot.lane.b32.xlu0 %v64, 88
    %v1388 = vpop.permute.xlu0 %1387
    %1393 = vrot.lane.b32.xlu0 %v69, 88
    %v1394 = vpop.permute.xlu0 %1393
    %vm1396 = vcmask 261120
    %v1398 = vsel %vm1396, %v1380, 0
    %1400 = vmatprep.subr.mxu0 0.0
    %1401 = vmatpush1.msra.mxu0 %v1382
    %1402 = vmatprep.subr.mxu0 0.0
    %1403 = vmatpush1.msra.mxu0 %v1384
    %1404 = vmatprep.subr.mxu0 0.0
    %1405 = vmatpush1.msra.mxu0 %v1386
    %1406 = vmatprep.subr.mxu0 0.0
    %1407 = vmatpush1.msra.mxu0 %v1388
    %1408 = vmatprep.subr.mxu0 0.0
    %1409 = vmatpush1.msra.mxu0 0.0
    %1410 = vmatprep.subr.mxu0 0.0
    %1411 = vmatpush1.msra.mxu0 0.0
    %1412 = vmatprep.subr.mxu0 0.0
    %1413 = vmatpush1.msra.mxu0 0.0
    %1414 = vmatprep.subr.mxu0 0.0
    %1415 = vmatpush1.msra.mxu0 0.0
    %1416 = vmatprep.subr.mxu0 0.0
    %1417 = vmatpush1.msra.mxu0 0.0
    %1418 = vmatprep.subr.mxu0 0.0
    %1419 = vmatpush1.msra.mxu0 0.0
    %1420 = vmatprep.subr.mxu0 0.0
    %1421 = vmatpush1.msra.mxu0 0.0
    %1422 = vmatprep.subr.mxu0 0.0
    %1423 = vmatpush1.msra.mxu0 0.0
    %1424 = vmatprep.subr.mxu0 0.0
    %1425 = vmatpush1.msra.mxu0 0.0
    %1426 = vmatprep.subr.mxu0 0.0
    %1427 = vmatpush1.msra.mxu0 0.0
    %1428 = vmatprep.subr.mxu0 0.0
    %1429 = vmatpush1.msra.mxu0 0.0
    %1430 = vmatprep.subr.mxu0 0.0
    %1431 = vmatpush1.msra.mxu0 0.0
    %1432 = vmatprep.subr.mxu0 0.0
    %1433 = vmatpush1.msra.mxu0 0.0
    %1434 = vmatprep.subr.mxu0 0.0
    %1435 = vmatpush1.msra.mxu0 0.0
    %1436 = vmatprep.subr.mxu0 0.0
    %1437 = vmatpush1.msra.mxu0 0.0
    %1438 = vmatprep.subr.mxu0 0.0
    %1439 = vmatpush1.msra.mxu0 0.0
    %1440 = vmatprep.subr.mxu0 0.0
    %1441 = vmatpush1.msra.mxu0 0.0
    %1442 = vmatprep.subr.mxu0 0.0
    %1443 = vmatpush1.msra.mxu0 0.0
    %1444 = vmatprep.subr.mxu0 0.0
    %1445 = vmatpush1.msra.mxu0 0.0
    %1446 = vmatprep.subr.mxu0 0.0
    %1447 = vmatpush1.msra.mxu0 0.0
    %1448 = vmatprep.subr.mxu0 0.0
    %1449 = vmatpush1.msra.mxu0 0.0
    %1450 = vmatprep.subr.mxu0 0.0
    %1451 = vmatpush1.msra.mxu0 0.0
    %1452 = vmatprep.subr.mxu0 0.0
    %1453 = vmatpush1.msra.mxu0 0.0
    %1454 = vmatprep.subr.mxu0 0.0
    %1455 = vmatpush1.msra.mxu0 0.0
    %1456 = vmatprep.subr.mxu0 0.0
    %1457 = vmatpush1.msra.mxu0 0.0
    %1458 = vmatprep.subr.mxu0 0.0
    %1459 = vmatpush1.msra.mxu0 0.0
    %1460 = vmatprep.subr.mxu0 0.0
    %1461 = vmatpush1.msra.mxu0 0.0
    %1462 = vmatprep.subr.mxu0 0.0
    %1463 = vmatpush1.msra.mxu0 0.0
    %1464 = vmatprep.mubr.f32.mxu0 0.0
    %1465 = vmatmul.mubr.f32.gmra.mrb[0].mxu0 %v1398
    %v1466 = vpop.f32.mrb[0].mxu0
    %v1467 = vadd.f32 %v1394, %v1466
    %v1468 = vpop.f32.mrb[0].mxu0
    %1469 = vdwg.mxu0
    %1470 = vrot.lane.b32.xlu0 %v987, 72
    %v1471 = vpop.permute.xlu0 %1470
    %1473 = vrot.lane.b32.xlu0 %v1214, 72
    %v1474 = vpop.permute.xlu0 %1473
    %v1476 = vsel %vm1203, %v1467, %v1471
    %vm1477 = vcmask 588800
    %v1478 = vsel %vm1477, %v1476, %v1474
    %vm1479 = vcmask 654336
    %v1480 = vsel %vm1479, %v1478, 0.0
    %1481 = vst [vmem:[%s2] sm:$0xff] %v1480
    // Predicated region
    $region14: #{attention_forward.1} parent=1 // pred_check
      _
    $region15: #{attention_forward.1} parent=1 // pred_check_branch
      %1483 = sbr.rel (0) target = $region17
    $region16: #{attention_forward.1} parent=1 // pred_region
      _
    $region17: #{attention_forward.1} parent=1 // pred_fallthru
      _
    // Predicated region
    $region18: #{attention_forward.1} parent=1 // pred_check
      _
    $region19: #{attention_forward.1} parent=1 // pred_check_branch
      %1485 = sbr.rel (0) target = $region21
    $region20: #{attention_forward.1} parent=1 // pred_region
      _
    $region21: #{attention_forward.1} parent=1 // pred_fallthru
      _
    %1486 = vsyncpa [#allocation3], 1

</llo_original>
